<compile_context>
chip_gen: v7x
topology: tpu7x:2x2x1
jax: 0.10.0
libtpu: 0.0.40
codegen_flags: <defaults>
</compile_context>

<pallas_src>
import functools

import jax
import jax.numpy as jnp
import numpy as np
from jax import lax
from jax.experimental import pallas as pl
from jax.experimental.pallas import tpu as pltpu


def ensemble_kernel(d1, x_ref, w_heads_ref, b_heads_ref, wf_ref, bf_ref, out_ref):
    """One batch tile of the ensemble head.

    x_ref       : [TB, C, HW]  f32   (NCHW with spatial flattened onto the lane axis)
    w_heads_ref : [C, DT]      bf16  (concat(w1, w2))
    b_heads_ref : [1, DT]      f32
    wf_ref      : [DT, PPAD]   bf16  (projection weight, zero-padded to 128 lanes)
    bf_ref      : [1, PPAD]    f32
    out_ref     : [TB, PPAD]   bf16
    """
    # Global average pool over the lane (HW) axis in f32: XLU reduce, overlaps with MXU.
    pooled = jnp.mean(x_ref[...], axis=2)                                # [TB, C] f32

    # Both per-model head Linears as one MXU contraction (bf16 operands, f32 acc).
    feats = jnp.dot(pooled.astype(jnp.bfloat16), w_heads_ref[...],
                    preferred_element_type=jnp.float32) + b_heads_ref[...]   # [TB, DT]

    # Per-model L2 normalize (F.normalize dim=1, eps=1e-12) without slice/concat:
    # one masked lane reduction + total; rsqrt(max(ss, eps^2)) == 1 / max(norm, eps).
    sq = feats * feats
    col = lax.broadcasted_iota(jnp.int32, sq.shape, 1)
    in_seg0 = col < d1
    ss_total = jnp.sum(sq, axis=1, keepdims=True)
    ss0 = jnp.sum(jnp.where(in_seg0, sq, 0.0), axis=1, keepdims=True)
    ss1 = ss_total - ss0
    scale = jnp.where(in_seg0,
                      lax.rsqrt(jnp.maximum(ss0, 1e-24)),
                      lax.rsqrt(jnp.maximum(ss1, 1e-24)))
    feats_n = feats * scale

    # Projection fusion: Linear + ReLU.  Padded lanes carry zero weights/bias, so they
    # stay 0 through the ReLU and do not perturb the final norm.
    proj = jnp.dot(feats_n.astype(jnp.bfloat16), wf_ref[...],
                   preferred_element_type=jnp.float32) + bf_ref[...]
    proj = jnp.maximum(proj, 0.0)

    ss = jnp.sum(proj * proj, axis=1, keepdims=True)
    out_ref[...] = (proj * lax.rsqrt(jnp.maximum(ss, 1e-24))).astype(out_ref.dtype)


def prepare_ensemble_params(params):
    """One-time parameter prep (hoisted out of the per-forward path)."""
    d1 = params["w1"].shape[1]
    d2 = params["w2"].shape[1]
    dt = d1 + d2
    p = params["wf"].shape[1]
    ppad = ((p + 127) // 128) * 128          # lane-dense output store

    w_heads = jnp.concatenate([params["w1"], params["w2"]], axis=1).astype(jnp.bfloat16)
    b_heads = jnp.concatenate([params["b1"], params["b2"]], axis=1).astype(jnp.float32)
    wf_pad = (jnp.zeros((dt, ppad), jnp.float32).at[:, :p].set(params["wf"])
              .astype(jnp.bfloat16))
    bf_pad = jnp.zeros((1, ppad), jnp.float32).at[:, :p].set(params["bf"])
    return {"w_heads": w_heads, "b_heads": b_heads, "wf_pad": wf_pad, "bf_pad": bf_pad,
            "d1": d1, "proj_dim": p}


@functools.partial(jax.jit, static_argnames=("d1", "proj_dim", "tile_b", "out_dtype"))
def model_ensemble_forward(x_nchw, w_heads, b_heads, wf_pad, bf_pad, *,
                           d1, proj_dim, tile_b=128, out_dtype=jnp.bfloat16):
    B, C, H, W = x_nchw.shape
    HW = H * W
    DT = w_heads.shape[1]
    PPAD = wf_pad.shape[1]

    # MXU-sized batch tile: 128 saturates v5e's 4x128x128 MXU; use 256 on v6e/v7x when
    # B allows.  The (8,128) rule only constrains the last two block dims, so tile_b
    # just needs to divide B (and keep the grid >= 2 steps for megacore to help).
    tile_b = min(tile_b, B)
    assert B % tile_b == 0 and (tile_b % 8 == 0 or tile_b == B)

    # Free view of contiguous NCHW: spatial flattened onto lanes, pooled in-kernel.
    x = x_nchw.reshape(B, C, HW)

    resident = lambda i: (0, 0)
    # Constant-index_map weights stay VMEM-resident across batch tiles; single-buffer
    # them (default would double-buffer and double their VMEM footprint at scale).
    w_spec = lambda shape: pl.BlockSpec(shape, resident, pipeline_mode=pl.Buffered(1))

    # VMEM budget: double-buffered x tile + double-buffered output tile + resident
    # weights, with 2x headroom (re-derive when scaling; v7x has 64 MiB physical).
    out_isize = np.dtype(out_dtype).itemsize
    weight_bytes = (w_heads.size * 2 + b_heads.size * 4
                    + wf_pad.size * 2 + bf_pad.size * 4)
    need = 2 * tile_b * C * HW * 4 + 2 * tile_b * PPAD * out_isize + weight_bytes
    vmem_limit = int(min(64 * 1024 * 1024, max(8 * 1024 * 1024, 2 * need)))

    out = pl.pallas_call(
        functools.partial(ensemble_kernel, d1),
        out_shape=jax.ShapeDtypeStruct((B, PPAD), out_dtype),
        grid=(B // tile_b,),
        in_specs=[
            pl.BlockSpec((tile_b, C, HW), lambda i: (i, 0, 0)),   # x: tiled over batch
            w_spec((C, DT)),                                      # head weights
            w_spec((1, DT)),                                      # head bias
            w_spec((DT, PPAD)),                                   # projection weight
            w_spec((1, PPAD)),                                    # projection bias
        ],
        out_specs=pl.BlockSpec((tile_b, PPAD), lambda i: (i, 0)),
        compiler_params=pltpu.CompilerParams(
            dimension_semantics=("parallel",),    # megacore / v7x 2-TC batch split
            vmem_limit_bytes=vmem_limit,
        ),
    )(x, w_heads, b_heads, wf_pad, bf_pad)
    return out[:, :proj_dim]


def reference_forward(x, params):
    pooled = jnp.mean(x, axis=(2, 3))
    f1 = pooled @ params["w1"] + params["b1"]
    f2 = pooled @ params["w2"] + params["b2"]

    def l2n(f):
        n = jnp.sqrt(jnp.sum(f * f, axis=1, keepdims=True))
        return f / jnp.maximum(n, 1e-12)

    feats = jnp.concatenate([l2n(f1), l2n(f2)], axis=1)
    proj = jnp.maximum(feats @ params["wf"] + params["bf"], 0.0)
    return l2n(proj)


def init_params(key, c, d1, d2):
    total_dim = d1 + d2
    proj_dim = total_dim // 2                # default: proj_dim = total_dim // 2
    ks = jax.random.split(key, 6)
    return {
        "w1": jax.random.normal(ks[0], (c, d1), jnp.float32) * 0.1,
        "b1": jax.random.normal(ks[1], (1, d1), jnp.float32) * 0.01,
        "w2": jax.random.normal(ks[2], (c, d2), jnp.float32) * 0.1,
        "b2": jax.random.normal(ks[3], (1, d2), jnp.float32) * 0.01,
        "wf": jax.random.normal(ks[4], (total_dim, proj_dim), jnp.float32) * 0.1,
        "bf": jax.random.normal(ks[5], (1, proj_dim), jnp.float32) * 0.01,
    }


if __name__ == "__main__":
    key = jax.random.PRNGKey(0)
    k_x, k_p = jax.random.split(key)

    # Small per-sample shapes; batch sized so tile_b=128 yields a 2-step "parallel"
    # grid (the pipeline warms up and both v7x TensorCores get a tile).
    B, C, H, W = 256, 4, 16, 16
    D1, D2 = 32, 32                          # total_dim = 64, proj_dim = 32

    x = jax.random.normal(k_x, (B, C, H, W), jnp.float32)
    params = init_params(k_p, C, D1, D2)
    prep = prepare_ensemble_params(params)   # one-time weight prep, outside the forward

    out = model_ensemble_forward(
        x, prep["w_heads"], prep["b_heads"], prep["wf_pad"], prep["bf_pad"],
        d1=prep["d1"], proj_dim=prep["proj_dim"], tile_b=128)
    out = jax.block_until_ready(out)

    ref = reference_forward(x, params)
    assert out.shape == (B, (D1 + D2) // 2)
    # bf16 matmul operands + bf16 output (f32 accumulation) vs. pure-f32 reference.
    np.testing.assert_allclose(np.asarray(out, dtype=np.float32), np.asarray(ref),
                               rtol=2e-2, atol=2e-2)

    print("KERNEL_OK")
</pallas_src>

<mosaic_0001>
module attributes {stable_mosaic.version = 11 : i64} {
  func.func @ensemble_kernel(%arg0: i32, %arg1: memref<128x4x256xf32, #tpu.memory_space<vmem>>, %arg2: memref<4x64xbf16, #tpu.memory_space<vmem>>, %arg3: memref<1x64xf32, #tpu.memory_space<vmem>>, %arg4: memref<64x128xbf16, #tpu.memory_space<vmem>>, %arg5: memref<1x128xf32, #tpu.memory_space<vmem>>, %arg6: memref<128x128xbf16, #tpu.memory_space<vmem>>) attributes {dimension_semantics = [#tpu.dimension_semantics<parallel>], iteration_bounds = array<i64: 2>, scalar_prefetch = 0 : i64, scratch_operands = 0 : i64, tpu.core_type = #tpu.core_type<tc>, window_params = [{transform_indices = @transform_0, window_bounds = array<i64: 128, 4, 256>}, {pipeline_mode = #tpu.pipeline_mode<synchronous>, transform_indices = @transform_1, window_bounds = array<i64: 4, 64>}, {pipeline_mode = #tpu.pipeline_mode<synchronous>, transform_indices = @transform_2, window_bounds = array<i64: 1, 64>}, {pipeline_mode = #tpu.pipeline_mode<synchronous>, transform_indices = @transform_3, window_bounds = array<i64: 64, 128>}, {pipeline_mode = #tpu.pipeline_mode<synchronous>, transform_indices = @transform_4, window_bounds = array<i64: 1, 128>}, {transform_indices = @transform_5, window_bounds = array<i64: 128, 128>}]} {
    %c0 = arith.constant 0 : index
    %c0_0 = arith.constant 0 : index
    %c0_1 = arith.constant 0 : index
    %0 = vector.load %arg1[%c0, %c0_0, %c0_1] : memref<128x4x256xf32, #tpu.memory_space<vmem>>, vector<128x4x256xf32>
    %cst = arith.constant dense<0.000000e+00> : vector<128x4xf32>
    %1 = vector.multi_reduction <add>, %0, %cst [2] : vector<128x4x256xf32> to vector<128x4xf32>
    %cst_2 = arith.constant 2.560000e+02 : f32
    %2 = vector.broadcast %cst_2 : f32 to vector<128x4xf32>
    %3 = arith.divf %1, %2 : vector<128x4xf32>
    %4 = arith.truncf %3 : vector<128x4xf32> to vector<128x4xbf16>
    %c0_3 = arith.constant 0 : index
    %c0_4 = arith.constant 0 : index
    %5 = vector.load %arg2[%c0_3, %c0_4] : memref<4x64xbf16, #tpu.memory_space<vmem>>, vector<4x64xbf16>
    %cst_5 = arith.constant dense<0.000000e+00> : vector<128x64xf32>
    %6 = tpu.matmul %4, %5, %cst_5 {dimension_numbers = #tpu.dot_dimension_numbers<[1], [0], [0], [1], [0, 0, 1, 1], [], []>} : vector<128x4xbf16>, vector<4x64xbf16>, vector<128x64xf32> -> vector<128x64xf32>
    %c0_6 = arith.constant 0 : index
    %c0_7 = arith.constant 0 : index
    %7 = vector.load %arg3[%c0_6, %c0_7] : memref<1x64xf32, #tpu.memory_space<vmem>>, vector<1x64xf32>
    %8 = vector.broadcast %7 : vector<1x64xf32> to vector<128x64xf32>
    %9 = arith.addf %6, %8 : vector<128x64xf32>
    %10 = arith.mulf %9, %9 : vector<128x64xf32>
    %11 = tpu.iota {dimensions = array<i32: 1>} : vector<128x64xi32>
    %c32_i32 = arith.constant 32 : i32
    %12 = vector.broadcast %c32_i32 : i32 to vector<128x64xi32>
    %13 = arith.cmpi slt, %11, %12 : vector<128x64xi32>
    %cst_8 = arith.constant dense<0.000000e+00> : vector<128xf32>
    %14 = vector.multi_reduction <add>, %10, %cst_8 [1] : vector<128x64xf32> to vector<128xf32>
    %15 = vector.shape_cast %14 : vector<128xf32> to vector<128x1xf32>
    %cst_9 = arith.constant 0.000000e+00 : f32
    %16 = vector.broadcast %cst_9 : f32 to vector<128x64xf32>
    %17 = arith.select %13, %10, %16 : vector<128x64xi1>, vector<128x64xf32>
    %cst_10 = arith.constant dense<0.000000e+00> : vector<128xf32>
    %18 = vector.multi_reduction <add>, %17, %cst_10 [1] : vector<128x64xf32> to vector<128xf32>
    %19 = vector.shape_cast %18 : vector<128xf32> to vector<128x1xf32>
    %20 = arith.subf %15, %19 : vector<128x1xf32>
    %cst_11 = arith.constant 1.000000e-24 : f32
    %21 = vector.broadcast %cst_11 : f32 to vector<128x1xf32>
    %22 = arith.maximumf %19, %21 : vector<128x1xf32>
    %23 = math.rsqrt %22 : vector<128x1xf32>
    %cst_12 = arith.constant 1.000000e-24 : f32
    %24 = vector.broadcast %cst_12 : f32 to vector<128x1xf32>
    %25 = arith.maximumf %20, %24 : vector<128x1xf32>
    %26 = math.rsqrt %25 : vector<128x1xf32>
    %27 = vector.shape_cast %23 : vector<128x1xf32> to vector<128x1xf32>
    %28 = vector.broadcast %27 : vector<128x1xf32> to vector<128x64xf32>
    %29 = vector.shape_cast %26 : vector<128x1xf32> to vector<128x1xf32>
    %30 = vector.broadcast %29 : vector<128x1xf32> to vector<128x64xf32>
    %31 = arith.select %13, %28, %30 : vector<128x64xi1>, vector<128x64xf32>
    %32 = arith.mulf %9, %31 : vector<128x64xf32>
    %33 = arith.truncf %32 : vector<128x64xf32> to vector<128x64xbf16>
    %c0_13 = arith.constant 0 : index
    %c0_14 = arith.constant 0 : index
    %34 = vector.load %arg4[%c0_13, %c0_14] : memref<64x128xbf16, #tpu.memory_space<vmem>>, vector<64x128xbf16>
    %cst_15 = arith.constant dense<0.000000e+00> : vector<128x128xf32>
    %35 = tpu.matmul %33, %34, %cst_15 {dimension_numbers = #tpu.dot_dimension_numbers<[1], [0], [0], [1], [0, 0, 1, 1], [], []>} : vector<128x64xbf16>, vector<64x128xbf16>, vector<128x128xf32> -> vector<128x128xf32>
    %c0_16 = arith.constant 0 : index
    %c0_17 = arith.constant 0 : index
    %36 = vector.load %arg5[%c0_16, %c0_17] : memref<1x128xf32, #tpu.memory_space<vmem>>, vector<1x128xf32>
    %37 = vector.broadcast %36 : vector<1x128xf32> to vector<128x128xf32>
    %38 = arith.addf %35, %37 : vector<128x128xf32>
    %cst_18 = arith.constant 0.000000e+00 : f32
    %39 = vector.broadcast %cst_18 : f32 to vector<128x128xf32>
    %40 = arith.maximumf %38, %39 : vector<128x128xf32>
    %41 = arith.mulf %40, %40 : vector<128x128xf32>
    %cst_19 = arith.constant dense<0.000000e+00> : vector<128xf32>
    %42 = vector.multi_reduction <add>, %41, %cst_19 [1] : vector<128x128xf32> to vector<128xf32>
    %43 = vector.shape_cast %42 : vector<128xf32> to vector<128x1xf32>
    %cst_20 = arith.constant 1.000000e-24 : f32
    %44 = vector.broadcast %cst_20 : f32 to vector<128x1xf32>
    %45 = arith.maximumf %43, %44 : vector<128x1xf32>
    %46 = math.rsqrt %45 : vector<128x1xf32>
    %47 = vector.broadcast %46 : vector<128x1xf32> to vector<128x128xf32>
    %48 = arith.mulf %40, %47 : vector<128x128xf32>
    %49 = arith.truncf %48 : vector<128x128xf32> to vector<128x128xbf16>
    %c0_21 = arith.constant 0 : index
    %c0_22 = arith.constant 0 : index
    %50 = vector.load %arg6[%c0_21, %c0_22] : memref<128x128xbf16, #tpu.memory_space<vmem>>, vector<128x128xbf16>
    tpu.vector_store %arg6[%c0_21, %c0_22], %49 {strides = array<i32>} : memref<128x128xbf16, #tpu.memory_space<vmem>>, vector<128x128xbf16>,
    return
  }
  func.func @transform_0(%arg0: i32) -> (i32, i32, i32) {
    %c0_i32 = arith.constant 0 : i32
    %c0_i32_0 = arith.constant 0 : i32
    %c0_i32_1 = arith.constant 0 : i32
    return %arg0, %c0_i32, %c0_i32_0 : i32, i32, i32
  }
  func.func @transform_1(%arg0: i32) -> (i32, i32) {
    %c0_i32 = arith.constant 0 : i32
    %c0_i32_0 = arith.constant 0 : i32
    %c0_i32_1 = arith.constant 0 : i32
    return %c0_i32, %c0_i32_0 : i32, i32
  }
  func.func @transform_2(%arg0: i32) -> (i32, i32) {
    %c0_i32 = arith.constant 0 : i32
    %c0_i32_0 = arith.constant 0 : i32
    %c0_i32_1 = arith.constant 0 : i32
    return %c0_i32, %c0_i32_0 : i32, i32
  }
  func.func @transform_3(%arg0: i32) -> (i32, i32) {
    %c0_i32 = arith.constant 0 : i32
    %c0_i32_0 = arith.constant 0 : i32
    %c0_i32_1 = arith.constant 0 : i32
    return %c0_i32, %c0_i32_0 : i32, i32
  }
  func.func @transform_4(%arg0: i32) -> (i32, i32) {
    %c0_i32 = arith.constant 0 : i32
    %c0_i32_0 = arith.constant 0 : i32
    %c0_i32_1 = arith.constant 0 : i32
    return %c0_i32, %c0_i32_0 : i32, i32
  }
  func.func @transform_5(%arg0: i32) -> (i32, i32) {
    %c0_i32 = arith.constant 0 : i32
    %c0_i32_0 = arith.constant 0 : i32
    return %arg0, %c0_i32 : i32, i32
  }
}

</mosaic_0001>

<llo_original>
// kernel: model_ensemble_forward.1
$region0: #{model_ensemble_forward.1}
  #allocation0 [shape = 'u32[]', space=smem, size = 0x4, offset = 0x4, fixed_abs, tag = 'smem constant byte address 0x4 - core index']
  #allocation1 [shape = 'u32[144,128]{1,0:T(1,128)}', space=vmem, size = 0x12000, scoped, tag = 'internal scratch']
  %s0 = inlined_call_operand.vmem [shape: f32[256,4,256], index: 0, kind: input, shape index: {}]
  %s1 = inlined_call_operand.vmem [shape: bf16[4,64], index: 1, kind: input, shape index: {}]
  %s2 = inlined_call_operand.vmem [shape: f32[1,64], index: 2, kind: input, shape index: {}]
  %s3 = inlined_call_operand.vmem [shape: bf16[64,128], index: 3, kind: input, shape index: {}]
  %s4 = inlined_call_operand.vmem [shape: f32[1,128], index: 4, kind: input, shape index: {}]
  %s5 = inlined_call_operand.vmem [shape: bf16[256,128], index: 5, kind: output, shape index: {}]
  %s6 = sld [smem:[#allocation0]]
  $region53: #{model_ensemble_forward.1} parent=0
    _
  %s8 = ssub.s32 1, %s6
  %s9 = scalar_select 0, %s8, %s6
  loop: start=0, step=1, limit=4
  $region2: #{model_ensemble_forward.1} parent=0 // loop_pre_header
    _
  $region3: #{model_ensemble_forward.1} parent=0 // loop_header
    %s11 = sphi 0, %s15
    %p12 = scmp.ge.s32.totalorder %s11, 4
    %s21 = sphi 0, %s23
    %s24 = sphi 0, %s21
    %s25 = sphi 0, %s24
    %s41 = sphi 0, %s25
    %s45 = sphi 0, %s45
    %s47 = sphi 0, %s45
    %s48 = sphi 0, %s47
    %s62 = sphi 0, %s48
    %s66 = sphi 0, %s66
    %s68 = sphi 0, %s66
    %s69 = sphi 0, %s68
    %s83 = sphi 0, %s69
    %s87 = sphi 0, %s87
    %s89 = sphi 0, %s87
    %s90 = sphi 0, %s89
    %s104 = sphi 0, %s90
    %s108 = sphi 0, %s108
    %s110 = sphi 0, %s108
    %s111 = sphi 0, %s110
    %s125 = sphi 0, %s111
    %s131 = sphi 0, %s133
    %s134 = sphi 0, %s131
    %s135 = sphi 0, %s134
    %s151 = sphi 0, %s135
  $region4: #{model_ensemble_forward.1} parent=0 // loop_header_branch
    %14 = sbr.rel (%p12) target = $region8
  $region5: #{model_ensemble_forward.1} parent=0 // loop_body
    %s16 = ssub.s32 %s11, 1
    %s17 = ssub.s32 %s11, 2
    %s18 = sadd.s32 %s11, 1
    %s19 = ssub.s32 %s11, %s18
    %p20 = scmp.eq.s32.totalorder %s19, 0
    %s22 = sadd.s32 %s21, 1
    %s23 = scalar_select %p20, %s21, %s22
    %p26 = pneg %p20
    %p27 = scmp.eq.s32.totalorder %s11, 1
    %p28 = por %p26, %p27
    %p29 = scmp.ne.s32.totalorder %s21, %s24
    %p30 = scmp.eq.s32.totalorder %s11, 0
    %p31 = por %p29, %p30
    %p32 = scmp.ne.s32.totalorder %s21, %s24
    %p33 = scmp.eq.s32.totalorder %s16, 1
    %p34 = por %p32, %p33
    %p35 = scmp.ne.s32.totalorder %s24, %s25
    %p36 = scmp.eq.s32.totalorder %s16, 0
    %p37 = por %p35, %p36
    %p38 = scmp.ne.s32.totalorder %s24, %s25
    %p39 = scmp.eq.s32.totalorder %s17, 1
    %p40 = por %p38, %p39
    %p42 = scmp.ne.s32.totalorder %s25, %s41
    %p43 = scmp.eq.s32.totalorder %s17, 0
    %p44 = por %p42, %p43
    %s46 = sadd.s32 %s45, 1
    %p49 = scmp.eq.s32.totalorder %s11, 1
    %p50 = scmp.ne.s32.totalorder %s45, %s47
    %p51 = scmp.eq.s32.totalorder %s11, 0
    %p52 = por %p50, %p51
    %p53 = scmp.ne.s32.totalorder %s45, %s47
    %p54 = scmp.eq.s32.totalorder %s16, 1
    %p55 = por %p53, %p54
    %p56 = scmp.ne.s32.totalorder %s47, %s48
    %p57 = scmp.eq.s32.totalorder %s16, 0
    %p58 = por %p56, %p57
    %p59 = scmp.ne.s32.totalorder %s47, %s48
    %p60 = scmp.eq.s32.totalorder %s17, 1
    %p61 = por %p59, %p60
    %p63 = scmp.ne.s32.totalorder %s48, %s62
    %p64 = scmp.eq.s32.totalorder %s17, 0
    %p65 = por %p63, %p64
    %s67 = sadd.s32 %s66, 1
    %p70 = scmp.eq.s32.totalorder %s11, 1
    %p71 = scmp.ne.s32.totalorder %s66, %s68
    %p72 = scmp.eq.s32.totalorder %s11, 0
    %p73 = por %p71, %p72
    %p74 = scmp.ne.s32.totalorder %s66, %s68
    %p75 = scmp.eq.s32.totalorder %s16, 1
    %p76 = por %p74, %p75
    %p77 = scmp.ne.s32.totalorder %s68, %s69
    %p78 = scmp.eq.s32.totalorder %s16, 0
    %p79 = por %p77, %p78
    %p80 = scmp.ne.s32.totalorder %s68, %s69
    %p81 = scmp.eq.s32.totalorder %s17, 1
    %p82 = por %p80, %p81
    %p84 = scmp.ne.s32.totalorder %s69, %s83
    %p85 = scmp.eq.s32.totalorder %s17, 0
    %p86 = por %p84, %p85
    %s88 = sadd.s32 %s87, 1
    %p91 = scmp.eq.s32.totalorder %s11, 1
    %p92 = scmp.ne.s32.totalorder %s87, %s89
    %p93 = scmp.eq.s32.totalorder %s11, 0
    %p94 = por %p92, %p93
    %p95 = scmp.ne.s32.totalorder %s87, %s89
    %p96 = scmp.eq.s32.totalorder %s16, 1
    %p97 = por %p95, %p96
    %p98 = scmp.ne.s32.totalorder %s89, %s90
    %p99 = scmp.eq.s32.totalorder %s16, 0
    %p100 = por %p98, %p99
    %p101 = scmp.ne.s32.totalorder %s89, %s90
    %p102 = scmp.eq.s32.totalorder %s17, 1
    %p103 = por %p101, %p102
    %p105 = scmp.ne.s32.totalorder %s90, %s104
    %p106 = scmp.eq.s32.totalorder %s17, 0
    %p107 = por %p105, %p106
    %s109 = sadd.s32 %s108, 1
    %p112 = scmp.eq.s32.totalorder %s11, 1
    %p113 = scmp.ne.s32.totalorder %s108, %s110
    %p114 = scmp.eq.s32.totalorder %s11, 0
    %p115 = por %p113, %p114
    %p116 = scmp.ne.s32.totalorder %s108, %s110
    %p117 = scmp.eq.s32.totalorder %s16, 1
    %p118 = por %p116, %p117
    %p119 = scmp.ne.s32.totalorder %s110, %s111
    %p120 = scmp.eq.s32.totalorder %s16, 0
    %p121 = por %p119, %p120
    %p122 = scmp.ne.s32.totalorder %s110, %s111
    %p123 = scmp.eq.s32.totalorder %s17, 1
    %p124 = por %p122, %p123
    %p126 = scmp.ne.s32.totalorder %s111, %s125
    %p127 = scmp.eq.s32.totalorder %s17, 0
    %p128 = por %p126, %p127
    %s129 = ssub.s32 %s11, %s18
    %p130 = scmp.eq.s32.totalorder %s129, 0
    %s132 = sadd.s32 %s131, 1
    %s133 = scalar_select %p130, %s131, %s132
    %p136 = pneg %p130
    %p137 = scmp.eq.s32.totalorder %s11, 1
    %p138 = por %p136, %p137
    %p139 = scmp.ne.s32.totalorder %s131, %s134
    %p140 = scmp.eq.s32.totalorder %s11, 0
    %p141 = por %p139, %p140
    %p142 = scmp.ne.s32.totalorder %s131, %s134
    %p143 = scmp.eq.s32.totalorder %s16, 1
    %p144 = por %p142, %p143
    %p145 = scmp.ne.s32.totalorder %s134, %s135
    %p146 = scmp.eq.s32.totalorder %s16, 0
    %p147 = por %p145, %p146
    %p148 = scmp.ne.s32.totalorder %s134, %s135
    %p149 = scmp.eq.s32.totalorder %s17, 1
    %p150 = por %p148, %p149
    %p152 = scmp.ne.s32.totalorder %s135, %s151
    %p153 = scmp.eq.s32.totalorder %s17, 0
    %p154 = por %p152, %p153
    %p155 = scmp.le.s32.totalorder 1, %s11
    %p156 = scmp.lt.s32.totalorder %s11, 3
    %p157 = pnand %p155, %p156
    %p158 = pneg %p157
    // Predicated region
    $region9: #{model_ensemble_forward.1} parent=5 // pred_check
      _
    $region10: #{model_ensemble_forward.1} parent=5 // pred_check_branch
      %160 = sbr.rel (%p157) target = $region12
    $region11: #{model_ensemble_forward.1} parent=5 // pred_region
      %s161 = ssub.s32 %s11, 1
      // Predicated region
      $region13: #{model_ensemble_forward.1} parent=11 // pred_check
        %p162 = pneg %p58
      $region14: #{model_ensemble_forward.1} parent=11 // pred_check_branch
        %164 = sbr.rel (%p162) target = $region16
      $region15: #{model_ensemble_forward.1} parent=11 // pred_region
        _
      $region16: #{model_ensemble_forward.1} parent=11 // pred_fallthru
        _
      // Predicated region
      $region17: #{model_ensemble_forward.1} parent=11 // pred_check
        %p165 = pneg %p79
      $region18: #{model_ensemble_forward.1} parent=11 // pred_check_branch
        %167 = sbr.rel (%p165) target = $region20
      $region19: #{model_ensemble_forward.1} parent=11 // pred_region
        _
      $region20: #{model_ensemble_forward.1} parent=11 // pred_fallthru
        _
      // Predicated region
      $region21: #{model_ensemble_forward.1} parent=11 // pred_check
        %p168 = pneg %p100
      $region22: #{model_ensemble_forward.1} parent=11 // pred_check_branch
        %170 = sbr.rel (%p168) target = $region24
      $region23: #{model_ensemble_forward.1} parent=11 // pred_region
        _
      $region24: #{model_ensemble_forward.1} parent=11 // pred_fallthru
        _
      // Predicated region
      $region25: #{model_ensemble_forward.1} parent=11 // pred_check
        %p171 = pneg %p121
      $region26: #{model_ensemble_forward.1} parent=11 // pred_check_branch
        %173 = sbr.rel (%p171) target = $region28
      $region27: #{model_ensemble_forward.1} parent=11 // pred_region
        _
      $region28: #{model_ensemble_forward.1} parent=11 // pred_fallthru
        _
    $region12: #{model_ensemble_forward.1} parent=5 // pred_fallthru
      _
    %p174 = scmp.lt.s32.totalorder %s11, 2
    // Predicated region
    $region29: #{model_ensemble_forward.1} parent=5 // pred_check
      %p175 = pneg %p174
    $region30: #{model_ensemble_forward.1} parent=5 // pred_check_branch
      %177 = sbr.rel (%p175) target = $region32
    $region31: #{model_ensemble_forward.1} parent=5 // pred_region
      // Predicated region
      $region33: #{model_ensemble_forward.1} parent=31 // pred_check
        %p178 = pneg %p31
      $region34: #{model_ensemble_forward.1} parent=31 // pred_check_branch
        %180 = sbr.rel (%p178) target = $region36
      $region35: #{model_ensemble_forward.1} parent=31 // pred_region
        %s181 = smul.u32 128, %s11
        %p182 = scmp.lt.s32.totalorder %s181, 255
        %s183 = scalar_select %p182, %s181, 255
        %s184 = smul.addr %s183, 2
        %s185 = smul.addr %s184, 4
        %s186 = scalar_lea.vmem %s0, %s185
        %s187 = smul.u32 128, %s11
      $region36: #{model_ensemble_forward.1} parent=31 // pred_fallthru
        _
    $region32: #{model_ensemble_forward.1} parent=5 // pred_fallthru
      _
    %p188 = scmp.le.s32.totalorder 1, %s11
    %p189 = scmp.lt.s32.totalorder %s11, 3
    %p190 = pnand %p188, %p189
    %p191 = pneg %p190
    // Predicated region
    $region37: #{model_ensemble_forward.1} parent=5 // pred_check
      _
    $region38: #{model_ensemble_forward.1} parent=5 // pred_check_branch
      %193 = sbr.rel (%p190) target = $region40
    $region39: #{model_ensemble_forward.1} parent=5 // pred_region
      %s194 = ssub.s32 %s11, 1
      %s195 = smul.u32 128, %s16
      %p196 = scmp.lt.s32.totalorder %s195, 255
      %s197 = scalar_select %p196, %s195, 255
      %s198 = smul.addr %s197, 2
      %s199 = smul.addr %s198, 4
      %s200 = scalar_lea.vmem %s0, %s199
      %p201 = pneg %p37
      %p202 = pneg %p34
      %p203 = pneg %p58
      %p204 = pneg %p55
      %p205 = pneg %p79
      %p206 = pneg %p76
      %p207 = pneg %p100
      %p208 = pneg %p97
      %p209 = pneg %p121
      %p210 = pneg %p118
      %p211 = pneg %p147
      %p212 = pneg %p144
      %s213 = smul.u32 16, %s16
      %p214 = scmp.lt.s32.totalorder %s213, 31
      %s215 = scalar_select %p214, %s213, 31
      %s216 = smul.addr %s215, 4
      %s217 = scalar_lea.vmem %s5, %s216
      %s218 = smul.u32 128, %s16
      %p219 = scmp.lt.s32.totalorder %s218, 255
      %s220 = scalar_select %p219, %s218, 255
      %s221 = smul.addr %s220, 2
      %s222 = smul.addr %s221, 4
      %s223 = scalar_lea.vmem %s0, %s222
      %s224 = smul.u32 128, %s16
      %s225 = smul.u32 16, %s16
      %p226 = scmp.lt.s32.totalorder %s225, 31
      %s227 = scalar_select %p226, %s225, 31
      %s228 = smul.addr %s227, 4
      %s229 = scalar_lea.vmem %s5, %s228
      %s230 = smul.u32 16, %s16
      %v232 = vld [vmem:[%s223] sm:$0xff]
      %v233 = vld [vmem:[%s223 + $0x8] sm:$0xff]
      %v234 = vld [vmem:[%s223 + $0x10] sm:$0xff]
      %v235 = vld [vmem:[%s223 + $0x18] sm:$0xff]
      %v236 = vld [vmem:[%s223 + $0x20] sm:$0xff]
      %v237 = vld [vmem:[%s223 + $0x28] sm:$0xff]
      %v238 = vld [vmem:[%s223 + $0x30] sm:$0xff]
      %v239 = vld [vmem:[%s223 + $0x38] sm:$0xff]
      %v240 = vld [vmem:[%s223 + $0x40] sm:$0xff]
      %v241 = vld [vmem:[%s223 + $0x48] sm:$0xff]
      %v242 = vld [vmem:[%s223 + $0x50] sm:$0xff]
      %v243 = vld [vmem:[%s223 + $0x58] sm:$0xff]
      %v244 = vld [vmem:[%s223 + $0x60] sm:$0xff]
      %v245 = vld [vmem:[%s223 + $0x68] sm:$0xff]
      %v246 = vld [vmem:[%s223 + $0x70] sm:$0xff]
      %v247 = vld [vmem:[%s223 + $0x78] sm:$0xff]
      %v248 = vld [vmem:[%s223 + $0x80] sm:$0xff]
      %v249 = vld [vmem:[%s223 + $0x88] sm:$0xff]
      %v250 = vld [vmem:[%s223 + $0x90] sm:$0xff]
      %v251 = vld [vmem:[%s223 + $0x98] sm:$0xff]
      %v252 = vld [vmem:[%s223 + $0xa0] sm:$0xff]
      %v253 = vld [vmem:[%s223 + $0xa8] sm:$0xff]
      %v254 = vld [vmem:[%s223 + $0xb0] sm:$0xff]
      %v255 = vld [vmem:[%s223 + $0xb8] sm:$0xff]
      %v256 = vld [vmem:[%s223 + $0xc0] sm:$0xff]
      %v257 = vld [vmem:[%s223 + $0xc8] sm:$0xff]
      %v258 = vld [vmem:[%s223 + $0xd0] sm:$0xff]
      %v259 = vld [vmem:[%s223 + $0xd8] sm:$0xff]
      %v260 = vld [vmem:[%s223 + $0xe0] sm:$0xff]
      %v261 = vld [vmem:[%s223 + $0xe8] sm:$0xff]
      %v262 = vld [vmem:[%s223 + $0xf0] sm:$0xff]
      %v263 = vld [vmem:[%s223 + $0xf8] sm:$0xff]
      %v264 = vld [vmem:[%s223 + $0x100] sm:$0xff]
      %v265 = vld [vmem:[%s223 + $0x108] sm:$0xff]
      %v266 = vld [vmem:[%s223 + $0x110] sm:$0xff]
      %v267 = vld [vmem:[%s223 + $0x118] sm:$0xff]
      %v268 = vld [vmem:[%s223 + $0x120] sm:$0xff]
      %v269 = vld [vmem:[%s223 + $0x128] sm:$0xff]
      %v270 = vld [vmem:[%s223 + $0x130] sm:$0xff]
      %v271 = vld [vmem:[%s223 + $0x138] sm:$0xff]
      %v272 = vld [vmem:[%s223 + $0x140] sm:$0xff]
      %v273 = vld [vmem:[%s223 + $0x148] sm:$0xff]
      %v274 = vld [vmem:[%s223 + $0x150] sm:$0xff]
      %v275 = vld [vmem:[%s223 + $0x158] sm:$0xff]
      %v276 = vld [vmem:[%s223 + $0x160] sm:$0xff]
      %v277 = vld [vmem:[%s223 + $0x168] sm:$0xff]
      %v278 = vld [vmem:[%s223 + $0x170] sm:$0xff]
      %v279 = vld [vmem:[%s223 + $0x178] sm:$0xff]
      %v280 = vld [vmem:[%s223 + $0x180] sm:$0xff]
      %v281 = vld [vmem:[%s223 + $0x188] sm:$0xff]
      %v282 = vld [vmem:[%s223 + $0x190] sm:$0xff]
      %v283 = vld [vmem:[%s223 + $0x198] sm:$0xff]
      %v284 = vld [vmem:[%s223 + $0x1a0] sm:$0xff]
      %v285 = vld [vmem:[%s223 + $0x1a8] sm:$0xff]
      %v286 = vld [vmem:[%s223 + $0x1b0] sm:$0xff]
      %v287 = vld [vmem:[%s223 + $0x1b8] sm:$0xff]
      %v288 = vld [vmem:[%s223 + $0x1c0] sm:$0xff]
      %v289 = vld [vmem:[%s223 + $0x1c8] sm:$0xff]
      %v290 = vld [vmem:[%s223 + $0x1d0] sm:$0xff]
      %v291 = vld [vmem:[%s223 + $0x1d8] sm:$0xff]
      %v292 = vld [vmem:[%s223 + $0x1e0] sm:$0xff]
      %v293 = vld [vmem:[%s223 + $0x1e8] sm:$0xff]
      %v294 = vld [vmem:[%s223 + $0x1f0] sm:$0xff]
      %v295 = vld [vmem:[%s223 + $0x1f8] sm:$0xff]
      %v296 = vld [vmem:[%s223 + $0x200] sm:$0xff]
      %v297 = vld [vmem:[%s223 + $0x208] sm:$0xff]
      %v298 = vld [vmem:[%s223 + $0x210] sm:$0xff]
      %v299 = vld [vmem:[%s223 + $0x218] sm:$0xff]
      %v300 = vld [vmem:[%s223 + $0x220] sm:$0xff]
      %v301 = vld [vmem:[%s223 + $0x228] sm:$0xff]
      %v302 = vld [vmem:[%s223 + $0x230] sm:$0xff]
      %v303 = vld [vmem:[%s223 + $0x238] sm:$0xff]
      %v304 = vld [vmem:[%s223 + $0x240] sm:$0xff]
      %v305 = vld [vmem:[%s223 + $0x248] sm:$0xff]
      %v306 = vld [vmem:[%s223 + $0x250] sm:$0xff]
      %v307 = vld [vmem:[%s223 + $0x258] sm:$0xff]
      %v308 = vld [vmem:[%s223 + $0x260] sm:$0xff]
      %v309 = vld [vmem:[%s223 + $0x268] sm:$0xff]
      %v310 = vld [vmem:[%s223 + $0x270] sm:$0xff]
      %v311 = vld [vmem:[%s223 + $0x278] sm:$0xff]
      %v312 = vld [vmem:[%s223 + $0x280] sm:$0xff]
      %v313 = vld [vmem:[%s223 + $0x288] sm:$0xff]
      %v314 = vld [vmem:[%s223 + $0x290] sm:$0xff]
      %v315 = vld [vmem:[%s223 + $0x298] sm:$0xff]
      %v316 = vld [vmem:[%s223 + $0x2a0] sm:$0xff]
      %v317 = vld [vmem:[%s223 + $0x2a8] sm:$0xff]
      %v318 = vld [vmem:[%s223 + $0x2b0] sm:$0xff]
      %v319 = vld [vmem:[%s223 + $0x2b8] sm:$0xff]
      %v320 = vld [vmem:[%s223 + $0x2c0] sm:$0xff]
      %v321 = vld [vmem:[%s223 + $0x2c8] sm:$0xff]
      %v322 = vld [vmem:[%s223 + $0x2d0] sm:$0xff]
      %v323 = vld [vmem:[%s223 + $0x2d8] sm:$0xff]
      %v324 = vld [vmem:[%s223 + $0x2e0] sm:$0xff]
      %v325 = vld [vmem:[%s223 + $0x2e8] sm:$0xff]
      %v326 = vld [vmem:[%s223 + $0x2f0] sm:$0xff]
      %v327 = vld [vmem:[%s223 + $0x2f8] sm:$0xff]
      %v328 = vld [vmem:[%s223 + $0x300] sm:$0xff]
      %v329 = vld [vmem:[%s223 + $0x308] sm:$0xff]
      %v330 = vld [vmem:[%s223 + $0x310] sm:$0xff]
      %v331 = vld [vmem:[%s223 + $0x318] sm:$0xff]
      %v332 = vld [vmem:[%s223 + $0x320] sm:$0xff]
      %v333 = vld [vmem:[%s223 + $0x328] sm:$0xff]
      %v334 = vld [vmem:[%s223 + $0x330] sm:$0xff]
      %v335 = vld [vmem:[%s223 + $0x338] sm:$0xff]
      %v336 = vld [vmem:[%s223 + $0x340] sm:$0xff]
      %v337 = vld [vmem:[%s223 + $0x348] sm:$0xff]
      %v338 = vld [vmem:[%s223 + $0x350] sm:$0xff]
      %v339 = vld [vmem:[%s223 + $0x358] sm:$0xff]
      %v340 = vld [vmem:[%s223 + $0x360] sm:$0xff]
      %v341 = vld [vmem:[%s223 + $0x368] sm:$0xff]
      %v342 = vld [vmem:[%s223 + $0x370] sm:$0xff]
      %v343 = vld [vmem:[%s223 + $0x378] sm:$0xff]
      %v344 = vld [vmem:[%s223 + $0x380] sm:$0xff]
      %v345 = vld [vmem:[%s223 + $0x388] sm:$0xff]
      %v346 = vld [vmem:[%s223 + $0x390] sm:$0xff]
      %v347 = vld [vmem:[%s223 + $0x398] sm:$0xff]
      %v348 = vld [vmem:[%s223 + $0x3a0] sm:$0xff]
      %v349 = vld [vmem:[%s223 + $0x3a8] sm:$0xff]
      %v350 = vld [vmem:[%s223 + $0x3b0] sm:$0xff]
      %v351 = vld [vmem:[%s223 + $0x3b8] sm:$0xff]
      %v352 = vld [vmem:[%s223 + $0x3c0] sm:$0xff]
      %v353 = vld [vmem:[%s223 + $0x3c8] sm:$0xff]
      %v354 = vld [vmem:[%s223 + $0x3d0] sm:$0xff]
      %v355 = vld [vmem:[%s223 + $0x3d8] sm:$0xff]
      %v356 = vld [vmem:[%s223 + $0x3e0] sm:$0xff]
      %v357 = vld [vmem:[%s223 + $0x3e8] sm:$0xff]
      %v358 = vld [vmem:[%s223 + $0x3f0] sm:$0xff]
      %v359 = vld [vmem:[%s223 + $0x3f8] sm:$0xff]
      %v488 = vcombine.high %v232, %v232
      %v489 = vcombine.high %v233, %v233
      %v490 = vcombine.high %v234, %v234
      %v491 = vcombine.high %v235, %v235
      %v492 = vcombine.high %v236, %v236
      %v493 = vcombine.high %v237, %v237
      %v494 = vcombine.high %v238, %v238
      %v495 = vcombine.high %v239, %v239
      %v496 = vcombine.high %v240, %v240
      %v497 = vcombine.high %v241, %v241
      %v498 = vcombine.high %v242, %v242
      %v499 = vcombine.high %v243, %v243
      %v500 = vcombine.high %v244, %v244
      %v501 = vcombine.high %v245, %v245
      %v502 = vcombine.high %v246, %v246
      %v503 = vcombine.high %v247, %v247
      %v504 = vcombine.high %v248, %v248
      %v505 = vcombine.high %v249, %v249
      %v506 = vcombine.high %v250, %v250
      %v507 = vcombine.high %v251, %v251
      %v508 = vcombine.high %v252, %v252
      %v509 = vcombine.high %v253, %v253
      %v510 = vcombine.high %v254, %v254
      %v511 = vcombine.high %v255, %v255
      %v512 = vcombine.high %v256, %v256
      %v513 = vcombine.high %v257, %v257
      %v514 = vcombine.high %v258, %v258
      %v515 = vcombine.high %v259, %v259
      %v516 = vcombine.high %v260, %v260
      %v517 = vcombine.high %v261, %v261
      %v518 = vcombine.high %v262, %v262
      %v519 = vcombine.high %v263, %v263
      %v520 = vcombine.high %v264, %v264
      %v521 = vcombine.high %v265, %v265
      %v522 = vcombine.high %v266, %v266
      %v523 = vcombine.high %v267, %v267
      %v524 = vcombine.high %v268, %v268
      %v525 = vcombine.high %v269, %v269
      %v526 = vcombine.high %v270, %v270
      %v527 = vcombine.high %v271, %v271
      %v528 = vcombine.high %v272, %v272
      %v529 = vcombine.high %v273, %v273
      %v530 = vcombine.high %v274, %v274
      %v531 = vcombine.high %v275, %v275
      %v532 = vcombine.high %v276, %v276
      %v533 = vcombine.high %v277, %v277
      %v534 = vcombine.high %v278, %v278
      %v535 = vcombine.high %v279, %v279
      %v536 = vcombine.high %v280, %v280
      %v537 = vcombine.high %v281, %v281
      %v538 = vcombine.high %v282, %v282
      %v539 = vcombine.high %v283, %v283
      %v540 = vcombine.high %v284, %v284
      %v541 = vcombine.high %v285, %v285
      %v542 = vcombine.high %v286, %v286
      %v543 = vcombine.high %v287, %v287
      %v544 = vcombine.high %v288, %v288
      %v545 = vcombine.high %v289, %v289
      %v546 = vcombine.high %v290, %v290
      %v547 = vcombine.high %v291, %v291
      %v548 = vcombine.high %v292, %v292
      %v549 = vcombine.high %v293, %v293
      %v550 = vcombine.high %v294, %v294
      %v551 = vcombine.high %v295, %v295
      %v552 = vcombine.high %v296, %v296
      %v553 = vcombine.high %v297, %v297
      %v554 = vcombine.high %v298, %v298
      %v555 = vcombine.high %v299, %v299
      %v556 = vcombine.high %v300, %v300
      %v557 = vcombine.high %v301, %v301
      %v558 = vcombine.high %v302, %v302
      %v559 = vcombine.high %v303, %v303
      %v560 = vcombine.high %v304, %v304
      %v561 = vcombine.high %v305, %v305
      %v562 = vcombine.high %v306, %v306
      %v563 = vcombine.high %v307, %v307
      %v564 = vcombine.high %v308, %v308
      %v565 = vcombine.high %v309, %v309
      %v566 = vcombine.high %v310, %v310
      %v567 = vcombine.high %v311, %v311
      %v568 = vcombine.high %v312, %v312
      %v569 = vcombine.high %v313, %v313
      %v570 = vcombine.high %v314, %v314
      %v571 = vcombine.high %v315, %v315
      %v572 = vcombine.high %v316, %v316
      %v573 = vcombine.high %v317, %v317
      %v574 = vcombine.high %v318, %v318
      %v575 = vcombine.high %v319, %v319
      %v576 = vcombine.high %v320, %v320
      %v577 = vcombine.high %v321, %v321
      %v578 = vcombine.high %v322, %v322
      %v579 = vcombine.high %v323, %v323
      %v580 = vcombine.high %v324, %v324
      %v581 = vcombine.high %v325, %v325
      %v582 = vcombine.high %v326, %v326
      %v583 = vcombine.high %v327, %v327
      %v584 = vcombine.high %v328, %v328
      %v585 = vcombine.high %v329, %v329
      %v586 = vcombine.high %v330, %v330
      %v587 = vcombine.high %v331, %v331
      %v588 = vcombine.high %v332, %v332
      %v589 = vcombine.high %v333, %v333
      %v590 = vcombine.high %v334, %v334
      %v591 = vcombine.high %v335, %v335
      %v592 = vcombine.high %v336, %v336
      %v593 = vcombine.high %v337, %v337
      %v594 = vcombine.high %v338, %v338
      %v595 = vcombine.high %v339, %v339
      %v596 = vcombine.high %v340, %v340
      %v597 = vcombine.high %v341, %v341
      %v598 = vcombine.high %v342, %v342
      %v599 = vcombine.high %v343, %v343
      %v600 = vcombine.high %v344, %v344
      %v601 = vcombine.high %v345, %v345
      %v602 = vcombine.high %v346, %v346
      %v603 = vcombine.high %v347, %v347
      %v604 = vcombine.high %v348, %v348
      %v605 = vcombine.high %v349, %v349
      %v606 = vcombine.high %v350, %v350
      %v607 = vcombine.high %v351, %v351
      %v608 = vcombine.high %v352, %v352
      %v609 = vcombine.high %v353, %v353
      %v610 = vcombine.high %v354, %v354
      %v611 = vcombine.high %v355, %v355
      %v612 = vcombine.high %v356, %v356
      %v613 = vcombine.high %v357, %v357
      %v614 = vcombine.high %v358, %v358
      %v615 = vcombine.high %v359, %v359
      %vm744 = vcmask 1043456
      %v745 = vsel %vm744, %v232, 0.0
      %v746 = vsel %vm744, %v488, 0.0
      %v747 = vadd.f32 %v745, %v746
      %748 = vadd.xlane.f32.xlu0 %v747
      %v749 = vpop.xlane.xlu0 %748
      %v750 = vsel %vm744, %v233, 0.0
      %v751 = vsel %vm744, %v489, 0.0
      %v752 = vadd.f32 %v750, %v751
      %753 = vadd.xlane.f32.xlu0 %v752
      %v754 = vpop.xlane.xlu0 %753
      %v755 = vsel %vm744, %v234, 0.0
      %v756 = vsel %vm744, %v490, 0.0
      %v757 = vadd.f32 %v755, %v756
      %758 = vadd.xlane.f32.xlu0 %v757
      %v759 = vpop.xlane.xlu0 %758
      %v760 = vsel %vm744, %v235, 0.0
      %v761 = vsel %vm744, %v491, 0.0
      %v762 = vadd.f32 %v760, %v761
      %763 = vadd.xlane.f32.xlu0 %v762
      %v764 = vpop.xlane.xlu0 %763
      %v765 = vsel %vm744, %v236, 0.0
      %v766 = vsel %vm744, %v492, 0.0
      %v767 = vadd.f32 %v765, %v766
      %768 = vadd.xlane.f32.xlu0 %v767
      %v769 = vpop.xlane.xlu0 %768
      %v770 = vsel %vm744, %v237, 0.0
      %v771 = vsel %vm744, %v493, 0.0
      %v772 = vadd.f32 %v770, %v771
      %773 = vadd.xlane.f32.xlu0 %v772
      %v774 = vpop.xlane.xlu0 %773
      %v775 = vsel %vm744, %v238, 0.0
      %v776 = vsel %vm744, %v494, 0.0
      %v777 = vadd.f32 %v775, %v776
      %778 = vadd.xlane.f32.xlu0 %v777
      %v779 = vpop.xlane.xlu0 %778
      %v780 = vsel %vm744, %v239, 0.0
      %v781 = vsel %vm744, %v495, 0.0
      %v782 = vadd.f32 %v780, %v781
      %783 = vadd.xlane.f32.xlu0 %v782
      %v784 = vpop.xlane.xlu0 %783
      %v785 = vsel %vm744, %v240, 0.0
      %v786 = vsel %vm744, %v496, 0.0
      %v787 = vadd.f32 %v785, %v786
      %788 = vadd.xlane.f32.xlu0 %v787
      %v789 = vpop.xlane.xlu0 %788
      %v790 = vsel %vm744, %v241, 0.0
      %v791 = vsel %vm744, %v497, 0.0
      %v792 = vadd.f32 %v790, %v791
      %793 = vadd.xlane.f32.xlu0 %v792
      %v794 = vpop.xlane.xlu0 %793
      %v795 = vsel %vm744, %v242, 0.0
      %v796 = vsel %vm744, %v498, 0.0
      %v797 = vadd.f32 %v795, %v796
      %798 = vadd.xlane.f32.xlu0 %v797
      %v799 = vpop.xlane.xlu0 %798
      %v800 = vsel %vm744, %v243, 0.0
      %v801 = vsel %vm744, %v499, 0.0
      %v802 = vadd.f32 %v800, %v801
      %803 = vadd.xlane.f32.xlu0 %v802
      %v804 = vpop.xlane.xlu0 %803
      %v805 = vsel %vm744, %v244, 0.0
      %v806 = vsel %vm744, %v500, 0.0
      %v807 = vadd.f32 %v805, %v806
      %808 = vadd.xlane.f32.xlu0 %v807
      %v809 = vpop.xlane.xlu0 %808
      %v810 = vsel %vm744, %v245, 0.0
      %v811 = vsel %vm744, %v501, 0.0
      %v812 = vadd.f32 %v810, %v811
      %813 = vadd.xlane.f32.xlu0 %v812
      %v814 = vpop.xlane.xlu0 %813
      %v815 = vsel %vm744, %v246, 0.0
      %v816 = vsel %vm744, %v502, 0.0
      %v817 = vadd.f32 %v815, %v816
      %818 = vadd.xlane.f32.xlu0 %v817
      %v819 = vpop.xlane.xlu0 %818
      %v820 = vsel %vm744, %v247, 0.0
      %v821 = vsel %vm744, %v503, 0.0
      %v822 = vadd.f32 %v820, %v821
      %823 = vadd.xlane.f32.xlu0 %v822
      %v824 = vpop.xlane.xlu0 %823
      %v825 = vsel %vm744, %v248, 0.0
      %v826 = vsel %vm744, %v504, 0.0
      %v827 = vadd.f32 %v825, %v826
      %828 = vadd.xlane.f32.xlu0 %v827
      %v829 = vpop.xlane.xlu0 %828
      %v830 = vsel %vm744, %v249, 0.0
      %v831 = vsel %vm744, %v505, 0.0
      %v832 = vadd.f32 %v830, %v831
      %833 = vadd.xlane.f32.xlu0 %v832
      %v834 = vpop.xlane.xlu0 %833
      %v835 = vsel %vm744, %v250, 0.0
      %v836 = vsel %vm744, %v506, 0.0
      %v837 = vadd.f32 %v835, %v836
      %838 = vadd.xlane.f32.xlu0 %v837
      %v839 = vpop.xlane.xlu0 %838
      %v840 = vsel %vm744, %v251, 0.0
      %v841 = vsel %vm744, %v507, 0.0
      %v842 = vadd.f32 %v840, %v841
      %843 = vadd.xlane.f32.xlu0 %v842
      %v844 = vpop.xlane.xlu0 %843
      %v845 = vsel %vm744, %v252, 0.0
      %v846 = vsel %vm744, %v508, 0.0
      %v847 = vadd.f32 %v845, %v846
      %848 = vadd.xlane.f32.xlu0 %v847
      %v849 = vpop.xlane.xlu0 %848
      %v850 = vsel %vm744, %v253, 0.0
      %v851 = vsel %vm744, %v509, 0.0
      %v852 = vadd.f32 %v850, %v851
      %853 = vadd.xlane.f32.xlu0 %v852
      %v854 = vpop.xlane.xlu0 %853
      %v855 = vsel %vm744, %v254, 0.0
      %v856 = vsel %vm744, %v510, 0.0
      %v857 = vadd.f32 %v855, %v856
      %858 = vadd.xlane.f32.xlu0 %v857
      %v859 = vpop.xlane.xlu0 %858
      %v860 = vsel %vm744, %v255, 0.0
      %v861 = vsel %vm744, %v511, 0.0
      %v862 = vadd.f32 %v860, %v861
      %863 = vadd.xlane.f32.xlu0 %v862
      %v864 = vpop.xlane.xlu0 %863
      %v865 = vsel %vm744, %v256, 0.0
      %v866 = vsel %vm744, %v512, 0.0
      %v867 = vadd.f32 %v865, %v866
      %868 = vadd.xlane.f32.xlu0 %v867
      %v869 = vpop.xlane.xlu0 %868
      %v870 = vsel %vm744, %v257, 0.0
      %v871 = vsel %vm744, %v513, 0.0
      %v872 = vadd.f32 %v870, %v871
      %873 = vadd.xlane.f32.xlu0 %v872
      %v874 = vpop.xlane.xlu0 %873
      %v875 = vsel %vm744, %v258, 0.0
      %v876 = vsel %vm744, %v514, 0.0
      %v877 = vadd.f32 %v875, %v876
      %878 = vadd.xlane.f32.xlu0 %v877
      %v879 = vpop.xlane.xlu0 %878
      %v880 = vsel %vm744, %v259, 0.0
      %v881 = vsel %vm744, %v515, 0.0
      %v882 = vadd.f32 %v880, %v881
      %883 = vadd.xlane.f32.xlu0 %v882
      %v884 = vpop.xlane.xlu0 %883
      %v885 = vsel %vm744, %v260, 0.0
      %v886 = vsel %vm744, %v516, 0.0
      %v887 = vadd.f32 %v885, %v886
      %888 = vadd.xlane.f32.xlu0 %v887
      %v889 = vpop.xlane.xlu0 %888
      %v890 = vsel %vm744, %v261, 0.0
      %v891 = vsel %vm744, %v517, 0.0
      %v892 = vadd.f32 %v890, %v891
      %893 = vadd.xlane.f32.xlu0 %v892
      %v894 = vpop.xlane.xlu0 %893
      %v895 = vsel %vm744, %v262, 0.0
      %v896 = vsel %vm744, %v518, 0.0
      %v897 = vadd.f32 %v895, %v896
      %898 = vadd.xlane.f32.xlu0 %v897
      %v899 = vpop.xlane.xlu0 %898
      %v900 = vsel %vm744, %v263, 0.0
      %v901 = vsel %vm744, %v519, 0.0
      %v902 = vadd.f32 %v900, %v901
      %903 = vadd.xlane.f32.xlu0 %v902
      %v904 = vpop.xlane.xlu0 %903
      %v905 = vsel %vm744, %v264, 0.0
      %v906 = vsel %vm744, %v520, 0.0
      %v907 = vadd.f32 %v905, %v906
      %908 = vadd.xlane.f32.xlu0 %v907
      %v909 = vpop.xlane.xlu0 %908
      %v910 = vsel %vm744, %v265, 0.0
      %v911 = vsel %vm744, %v521, 0.0
      %v912 = vadd.f32 %v910, %v911
      %913 = vadd.xlane.f32.xlu0 %v912
      %v914 = vpop.xlane.xlu0 %913
      %v915 = vsel %vm744, %v266, 0.0
      %v916 = vsel %vm744, %v522, 0.0
      %v917 = vadd.f32 %v915, %v916
      %918 = vadd.xlane.f32.xlu0 %v917
      %v919 = vpop.xlane.xlu0 %918
      %v920 = vsel %vm744, %v267, 0.0
      %v921 = vsel %vm744, %v523, 0.0
      %v922 = vadd.f32 %v920, %v921
      %923 = vadd.xlane.f32.xlu0 %v922
      %v924 = vpop.xlane.xlu0 %923
      %v925 = vsel %vm744, %v268, 0.0
      %v926 = vsel %vm744, %v524, 0.0
      %v927 = vadd.f32 %v925, %v926
      %928 = vadd.xlane.f32.xlu0 %v927
      %v929 = vpop.xlane.xlu0 %928
      %v930 = vsel %vm744, %v269, 0.0
      %v931 = vsel %vm744, %v525, 0.0
      %v932 = vadd.f32 %v930, %v931
      %933 = vadd.xlane.f32.xlu0 %v932
      %v934 = vpop.xlane.xlu0 %933
      %v935 = vsel %vm744, %v270, 0.0
      %v936 = vsel %vm744, %v526, 0.0
      %v937 = vadd.f32 %v935, %v936
      %938 = vadd.xlane.f32.xlu0 %v937
      %v939 = vpop.xlane.xlu0 %938
      %v940 = vsel %vm744, %v271, 0.0
      %v941 = vsel %vm744, %v527, 0.0
      %v942 = vadd.f32 %v940, %v941
      %943 = vadd.xlane.f32.xlu0 %v942
      %v944 = vpop.xlane.xlu0 %943
      %v945 = vsel %vm744, %v272, 0.0
      %v946 = vsel %vm744, %v528, 0.0
      %v947 = vadd.f32 %v945, %v946
      %948 = vadd.xlane.f32.xlu0 %v947
      %v949 = vpop.xlane.xlu0 %948
      %v950 = vsel %vm744, %v273, 0.0
      %v951 = vsel %vm744, %v529, 0.0
      %v952 = vadd.f32 %v950, %v951
      %953 = vadd.xlane.f32.xlu0 %v952
      %v954 = vpop.xlane.xlu0 %953
      %v955 = vsel %vm744, %v274, 0.0
      %v956 = vsel %vm744, %v530, 0.0
      %v957 = vadd.f32 %v955, %v956
      %958 = vadd.xlane.f32.xlu0 %v957
      %v959 = vpop.xlane.xlu0 %958
      %v960 = vsel %vm744, %v275, 0.0
      %v961 = vsel %vm744, %v531, 0.0
      %v962 = vadd.f32 %v960, %v961
      %963 = vadd.xlane.f32.xlu0 %v962
      %v964 = vpop.xlane.xlu0 %963
      %v965 = vsel %vm744, %v276, 0.0
      %v966 = vsel %vm744, %v532, 0.0
      %v967 = vadd.f32 %v965, %v966
      %968 = vadd.xlane.f32.xlu0 %v967
      %v969 = vpop.xlane.xlu0 %968
      %v970 = vsel %vm744, %v277, 0.0
      %v971 = vsel %vm744, %v533, 0.0
      %v972 = vadd.f32 %v970, %v971
      %973 = vadd.xlane.f32.xlu0 %v972
      %v974 = vpop.xlane.xlu0 %973
      %v975 = vsel %vm744, %v278, 0.0
      %v976 = vsel %vm744, %v534, 0.0
      %v977 = vadd.f32 %v975, %v976
      %978 = vadd.xlane.f32.xlu0 %v977
      %v979 = vpop.xlane.xlu0 %978
      %v980 = vsel %vm744, %v279, 0.0
      %v981 = vsel %vm744, %v535, 0.0
      %v982 = vadd.f32 %v980, %v981
      %983 = vadd.xlane.f32.xlu0 %v982
      %v984 = vpop.xlane.xlu0 %983
      %v985 = vsel %vm744, %v280, 0.0
      %v986 = vsel %vm744, %v536, 0.0
      %v987 = vadd.f32 %v985, %v986
      %988 = vadd.xlane.f32.xlu0 %v987
      %v989 = vpop.xlane.xlu0 %988
      %v990 = vsel %vm744, %v281, 0.0
      %v991 = vsel %vm744, %v537, 0.0
      %v992 = vadd.f32 %v990, %v991
      %993 = vadd.xlane.f32.xlu0 %v992
      %v994 = vpop.xlane.xlu0 %993
      %v995 = vsel %vm744, %v282, 0.0
      %v996 = vsel %vm744, %v538, 0.0
      %v997 = vadd.f32 %v995, %v996
      %998 = vadd.xlane.f32.xlu0 %v997
      %v999 = vpop.xlane.xlu0 %998
      %v1000 = vsel %vm744, %v283, 0.0
      %v1001 = vsel %vm744, %v539, 0.0
      %v1002 = vadd.f32 %v1000, %v1001
      %1003 = vadd.xlane.f32.xlu0 %v1002
      %v1004 = vpop.xlane.xlu0 %1003
      %v1005 = vsel %vm744, %v284, 0.0
      %v1006 = vsel %vm744, %v540, 0.0
      %v1007 = vadd.f32 %v1005, %v1006
      %1008 = vadd.xlane.f32.xlu0 %v1007
      %v1009 = vpop.xlane.xlu0 %1008
      %v1010 = vsel %vm744, %v285, 0.0
      %v1011 = vsel %vm744, %v541, 0.0
      %v1012 = vadd.f32 %v1010, %v1011
      %1013 = vadd.xlane.f32.xlu0 %v1012
      %v1014 = vpop.xlane.xlu0 %1013
      %v1015 = vsel %vm744, %v286, 0.0
      %v1016 = vsel %vm744, %v542, 0.0
      %v1017 = vadd.f32 %v1015, %v1016
      %1018 = vadd.xlane.f32.xlu0 %v1017
      %v1019 = vpop.xlane.xlu0 %1018
      %v1020 = vsel %vm744, %v287, 0.0
      %v1021 = vsel %vm744, %v543, 0.0
      %v1022 = vadd.f32 %v1020, %v1021
      %1023 = vadd.xlane.f32.xlu0 %v1022
      %v1024 = vpop.xlane.xlu0 %1023
      %v1025 = vsel %vm744, %v288, 0.0
      %v1026 = vsel %vm744, %v544, 0.0
      %v1027 = vadd.f32 %v1025, %v1026
      %1028 = vadd.xlane.f32.xlu0 %v1027
      %v1029 = vpop.xlane.xlu0 %1028
      %v1030 = vsel %vm744, %v289, 0.0
      %v1031 = vsel %vm744, %v545, 0.0
      %v1032 = vadd.f32 %v1030, %v1031
      %1033 = vadd.xlane.f32.xlu0 %v1032
      %v1034 = vpop.xlane.xlu0 %1033
      %v1035 = vsel %vm744, %v290, 0.0
      %v1036 = vsel %vm744, %v546, 0.0
      %v1037 = vadd.f32 %v1035, %v1036
      %1038 = vadd.xlane.f32.xlu0 %v1037
      %v1039 = vpop.xlane.xlu0 %1038
      %v1040 = vsel %vm744, %v291, 0.0
      %v1041 = vsel %vm744, %v547, 0.0
      %v1042 = vadd.f32 %v1040, %v1041
      %1043 = vadd.xlane.f32.xlu0 %v1042
      %v1044 = vpop.xlane.xlu0 %1043
      %v1045 = vsel %vm744, %v292, 0.0
      %v1046 = vsel %vm744, %v548, 0.0
      %v1047 = vadd.f32 %v1045, %v1046
      %1048 = vadd.xlane.f32.xlu0 %v1047
      %v1049 = vpop.xlane.xlu0 %1048
      %v1050 = vsel %vm744, %v293, 0.0
      %v1051 = vsel %vm744, %v549, 0.0
      %v1052 = vadd.f32 %v1050, %v1051
      %1053 = vadd.xlane.f32.xlu0 %v1052
      %v1054 = vpop.xlane.xlu0 %1053
      %v1055 = vsel %vm744, %v294, 0.0
      %v1056 = vsel %vm744, %v550, 0.0
      %v1057 = vadd.f32 %v1055, %v1056
      %1058 = vadd.xlane.f32.xlu0 %v1057
      %v1059 = vpop.xlane.xlu0 %1058
      %v1060 = vsel %vm744, %v295, 0.0
      %v1061 = vsel %vm744, %v551, 0.0
      %v1062 = vadd.f32 %v1060, %v1061
      %1063 = vadd.xlane.f32.xlu0 %v1062
      %v1064 = vpop.xlane.xlu0 %1063
      %v1065 = vsel %vm744, %v296, 0.0
      %v1066 = vsel %vm744, %v552, 0.0
      %v1067 = vadd.f32 %v1065, %v1066
      %1068 = vadd.xlane.f32.xlu0 %v1067
      %v1069 = vpop.xlane.xlu0 %1068
      %v1070 = vsel %vm744, %v297, 0.0
      %v1071 = vsel %vm744, %v553, 0.0
      %v1072 = vadd.f32 %v1070, %v1071
      %1073 = vadd.xlane.f32.xlu0 %v1072
      %v1074 = vpop.xlane.xlu0 %1073
      %v1075 = vsel %vm744, %v298, 0.0
      %v1076 = vsel %vm744, %v554, 0.0
      %v1077 = vadd.f32 %v1075, %v1076
      %1078 = vadd.xlane.f32.xlu0 %v1077
      %v1079 = vpop.xlane.xlu0 %1078
      %v1080 = vsel %vm744, %v299, 0.0
      %v1081 = vsel %vm744, %v555, 0.0
      %v1082 = vadd.f32 %v1080, %v1081
      %1083 = vadd.xlane.f32.xlu0 %v1082
      %v1084 = vpop.xlane.xlu0 %1083
      %v1085 = vsel %vm744, %v300, 0.0
      %v1086 = vsel %vm744, %v556, 0.0
      %v1087 = vadd.f32 %v1085, %v1086
      %1088 = vadd.xlane.f32.xlu0 %v1087
      %v1089 = vpop.xlane.xlu0 %1088
      %v1090 = vsel %vm744, %v301, 0.0
      %v1091 = vsel %vm744, %v557, 0.0
      %v1092 = vadd.f32 %v1090, %v1091
      %1093 = vadd.xlane.f32.xlu0 %v1092
      %v1094 = vpop.xlane.xlu0 %1093
      %v1095 = vsel %vm744, %v302, 0.0
      %v1096 = vsel %vm744, %v558, 0.0
      %v1097 = vadd.f32 %v1095, %v1096
      %1098 = vadd.xlane.f32.xlu0 %v1097
      %v1099 = vpop.xlane.xlu0 %1098
      %v1100 = vsel %vm744, %v303, 0.0
      %v1101 = vsel %vm744, %v559, 0.0
      %v1102 = vadd.f32 %v1100, %v1101
      %1103 = vadd.xlane.f32.xlu0 %v1102
      %v1104 = vpop.xlane.xlu0 %1103
      %v1105 = vsel %vm744, %v304, 0.0
      %v1106 = vsel %vm744, %v560, 0.0
      %v1107 = vadd.f32 %v1105, %v1106
      %1108 = vadd.xlane.f32.xlu0 %v1107
      %v1109 = vpop.xlane.xlu0 %1108
      %v1110 = vsel %vm744, %v305, 0.0
      %v1111 = vsel %vm744, %v561, 0.0
      %v1112 = vadd.f32 %v1110, %v1111
      %1113 = vadd.xlane.f32.xlu0 %v1112
      %v1114 = vpop.xlane.xlu0 %1113
      %v1115 = vsel %vm744, %v306, 0.0
      %v1116 = vsel %vm744, %v562, 0.0
      %v1117 = vadd.f32 %v1115, %v1116
      %1118 = vadd.xlane.f32.xlu0 %v1117
      %v1119 = vpop.xlane.xlu0 %1118
      %v1120 = vsel %vm744, %v307, 0.0
      %v1121 = vsel %vm744, %v563, 0.0
      %v1122 = vadd.f32 %v1120, %v1121
      %1123 = vadd.xlane.f32.xlu0 %v1122
      %v1124 = vpop.xlane.xlu0 %1123
      %v1125 = vsel %vm744, %v308, 0.0
      %v1126 = vsel %vm744, %v564, 0.0
      %v1127 = vadd.f32 %v1125, %v1126
      %1128 = vadd.xlane.f32.xlu0 %v1127
      %v1129 = vpop.xlane.xlu0 %1128
      %v1130 = vsel %vm744, %v309, 0.0
      %v1131 = vsel %vm744, %v565, 0.0
      %v1132 = vadd.f32 %v1130, %v1131
      %1133 = vadd.xlane.f32.xlu0 %v1132
      %v1134 = vpop.xlane.xlu0 %1133
      %v1135 = vsel %vm744, %v310, 0.0
      %v1136 = vsel %vm744, %v566, 0.0
      %v1137 = vadd.f32 %v1135, %v1136
      %1138 = vadd.xlane.f32.xlu0 %v1137
      %v1139 = vpop.xlane.xlu0 %1138
      %v1140 = vsel %vm744, %v311, 0.0
      %v1141 = vsel %vm744, %v567, 0.0
      %v1142 = vadd.f32 %v1140, %v1141
      %1143 = vadd.xlane.f32.xlu0 %v1142
      %v1144 = vpop.xlane.xlu0 %1143
      %v1145 = vsel %vm744, %v312, 0.0
      %v1146 = vsel %vm744, %v568, 0.0
      %v1147 = vadd.f32 %v1145, %v1146
      %1148 = vadd.xlane.f32.xlu0 %v1147
      %v1149 = vpop.xlane.xlu0 %1148
      %v1150 = vsel %vm744, %v313, 0.0
      %v1151 = vsel %vm744, %v569, 0.0
      %v1152 = vadd.f32 %v1150, %v1151
      %1153 = vadd.xlane.f32.xlu0 %v1152
      %v1154 = vpop.xlane.xlu0 %1153
      %v1155 = vsel %vm744, %v314, 0.0
      %v1156 = vsel %vm744, %v570, 0.0
      %v1157 = vadd.f32 %v1155, %v1156
      %1158 = vadd.xlane.f32.xlu0 %v1157
      %v1159 = vpop.xlane.xlu0 %1158
      %v1160 = vsel %vm744, %v315, 0.0
      %v1161 = vsel %vm744, %v571, 0.0
      %v1162 = vadd.f32 %v1160, %v1161
      %1163 = vadd.xlane.f32.xlu0 %v1162
      %v1164 = vpop.xlane.xlu0 %1163
      %v1165 = vsel %vm744, %v316, 0.0
      %v1166 = vsel %vm744, %v572, 0.0
      %v1167 = vadd.f32 %v1165, %v1166
      %1168 = vadd.xlane.f32.xlu0 %v1167
      %v1169 = vpop.xlane.xlu0 %1168
      %v1170 = vsel %vm744, %v317, 0.0
      %v1171 = vsel %vm744, %v573, 0.0
      %v1172 = vadd.f32 %v1170, %v1171
      %1173 = vadd.xlane.f32.xlu0 %v1172
      %v1174 = vpop.xlane.xlu0 %1173
      %v1175 = vsel %vm744, %v318, 0.0
      %v1176 = vsel %vm744, %v574, 0.0
      %v1177 = vadd.f32 %v1175, %v1176
      %1178 = vadd.xlane.f32.xlu0 %v1177
      %v1179 = vpop.xlane.xlu0 %1178
      %v1180 = vsel %vm744, %v319, 0.0
      %v1181 = vsel %vm744, %v575, 0.0
      %v1182 = vadd.f32 %v1180, %v1181
      %1183 = vadd.xlane.f32.xlu0 %v1182
      %v1184 = vpop.xlane.xlu0 %1183
      %v1185 = vsel %vm744, %v320, 0.0
      %v1186 = vsel %vm744, %v576, 0.0
      %v1187 = vadd.f32 %v1185, %v1186
      %1188 = vadd.xlane.f32.xlu0 %v1187
      %v1189 = vpop.xlane.xlu0 %1188
      %v1190 = vsel %vm744, %v321, 0.0
      %v1191 = vsel %vm744, %v577, 0.0
      %v1192 = vadd.f32 %v1190, %v1191
      %1193 = vadd.xlane.f32.xlu0 %v1192
      %v1194 = vpop.xlane.xlu0 %1193
      %v1195 = vsel %vm744, %v322, 0.0
      %v1196 = vsel %vm744, %v578, 0.0
      %v1197 = vadd.f32 %v1195, %v1196
      %1198 = vadd.xlane.f32.xlu0 %v1197
      %v1199 = vpop.xlane.xlu0 %1198
      %v1200 = vsel %vm744, %v323, 0.0
      %v1201 = vsel %vm744, %v579, 0.0
      %v1202 = vadd.f32 %v1200, %v1201
      %1203 = vadd.xlane.f32.xlu0 %v1202
      %v1204 = vpop.xlane.xlu0 %1203
      %v1205 = vsel %vm744, %v324, 0.0
      %v1206 = vsel %vm744, %v580, 0.0
      %v1207 = vadd.f32 %v1205, %v1206
      %1208 = vadd.xlane.f32.xlu0 %v1207
      %v1209 = vpop.xlane.xlu0 %1208
      %v1210 = vsel %vm744, %v325, 0.0
      %v1211 = vsel %vm744, %v581, 0.0
      %v1212 = vadd.f32 %v1210, %v1211
      %1213 = vadd.xlane.f32.xlu0 %v1212
      %v1214 = vpop.xlane.xlu0 %1213
      %v1215 = vsel %vm744, %v326, 0.0
      %v1216 = vsel %vm744, %v582, 0.0
      %v1217 = vadd.f32 %v1215, %v1216
      %1218 = vadd.xlane.f32.xlu0 %v1217
      %v1219 = vpop.xlane.xlu0 %1218
      %v1220 = vsel %vm744, %v327, 0.0
      %v1221 = vsel %vm744, %v583, 0.0
      %v1222 = vadd.f32 %v1220, %v1221
      %1223 = vadd.xlane.f32.xlu0 %v1222
      %v1224 = vpop.xlane.xlu0 %1223
      %v1225 = vsel %vm744, %v328, 0.0
      %v1226 = vsel %vm744, %v584, 0.0
      %v1227 = vadd.f32 %v1225, %v1226
      %1228 = vadd.xlane.f32.xlu0 %v1227
      %v1229 = vpop.xlane.xlu0 %1228
      %v1230 = vsel %vm744, %v329, 0.0
      %v1231 = vsel %vm744, %v585, 0.0
      %v1232 = vadd.f32 %v1230, %v1231
      %1233 = vadd.xlane.f32.xlu0 %v1232
      %v1234 = vpop.xlane.xlu0 %1233
      %v1235 = vsel %vm744, %v330, 0.0
      %v1236 = vsel %vm744, %v586, 0.0
      %v1237 = vadd.f32 %v1235, %v1236
      %1238 = vadd.xlane.f32.xlu0 %v1237
      %v1239 = vpop.xlane.xlu0 %1238
      %v1240 = vsel %vm744, %v331, 0.0
      %v1241 = vsel %vm744, %v587, 0.0
      %v1242 = vadd.f32 %v1240, %v1241
      %1243 = vadd.xlane.f32.xlu0 %v1242
      %v1244 = vpop.xlane.xlu0 %1243
      %v1245 = vsel %vm744, %v332, 0.0
      %v1246 = vsel %vm744, %v588, 0.0
      %v1247 = vadd.f32 %v1245, %v1246
      %1248 = vadd.xlane.f32.xlu0 %v1247
      %v1249 = vpop.xlane.xlu0 %1248
      %v1250 = vsel %vm744, %v333, 0.0
      %v1251 = vsel %vm744, %v589, 0.0
      %v1252 = vadd.f32 %v1250, %v1251
      %1253 = vadd.xlane.f32.xlu0 %v1252
      %v1254 = vpop.xlane.xlu0 %1253
      %v1255 = vsel %vm744, %v334, 0.0
      %v1256 = vsel %vm744, %v590, 0.0
      %v1257 = vadd.f32 %v1255, %v1256
      %1258 = vadd.xlane.f32.xlu0 %v1257
      %v1259 = vpop.xlane.xlu0 %1258
      %v1260 = vsel %vm744, %v335, 0.0
      %v1261 = vsel %vm744, %v591, 0.0
      %v1262 = vadd.f32 %v1260, %v1261
      %1263 = vadd.xlane.f32.xlu0 %v1262
      %v1264 = vpop.xlane.xlu0 %1263
      %v1265 = vsel %vm744, %v336, 0.0
      %v1266 = vsel %vm744, %v592, 0.0
      %v1267 = vadd.f32 %v1265, %v1266
      %1268 = vadd.xlane.f32.xlu0 %v1267
      %v1269 = vpop.xlane.xlu0 %1268
      %v1270 = vsel %vm744, %v337, 0.0
      %v1271 = vsel %vm744, %v593, 0.0
      %v1272 = vadd.f32 %v1270, %v1271
      %1273 = vadd.xlane.f32.xlu0 %v1272
      %v1274 = vpop.xlane.xlu0 %1273
      %v1275 = vsel %vm744, %v338, 0.0
      %v1276 = vsel %vm744, %v594, 0.0
      %v1277 = vadd.f32 %v1275, %v1276
      %1278 = vadd.xlane.f32.xlu0 %v1277
      %v1279 = vpop.xlane.xlu0 %1278
      %v1280 = vsel %vm744, %v339, 0.0
      %v1281 = vsel %vm744, %v595, 0.0
      %v1282 = vadd.f32 %v1280, %v1281
      %1283 = vadd.xlane.f32.xlu0 %v1282
      %v1284 = vpop.xlane.xlu0 %1283
      %v1285 = vsel %vm744, %v340, 0.0
      %v1286 = vsel %vm744, %v596, 0.0
      %v1287 = vadd.f32 %v1285, %v1286
      %1288 = vadd.xlane.f32.xlu0 %v1287
      %v1289 = vpop.xlane.xlu0 %1288
      %v1290 = vsel %vm744, %v341, 0.0
      %v1291 = vsel %vm744, %v597, 0.0
      %v1292 = vadd.f32 %v1290, %v1291
      %1293 = vadd.xlane.f32.xlu0 %v1292
      %v1294 = vpop.xlane.xlu0 %1293
      %v1295 = vsel %vm744, %v342, 0.0
      %v1296 = vsel %vm744, %v598, 0.0
      %v1297 = vadd.f32 %v1295, %v1296
      %1298 = vadd.xlane.f32.xlu0 %v1297
      %v1299 = vpop.xlane.xlu0 %1298
      %v1300 = vsel %vm744, %v343, 0.0
      %v1301 = vsel %vm744, %v599, 0.0
      %v1302 = vadd.f32 %v1300, %v1301
      %1303 = vadd.xlane.f32.xlu0 %v1302
      %v1304 = vpop.xlane.xlu0 %1303
      %v1305 = vsel %vm744, %v344, 0.0
      %v1306 = vsel %vm744, %v600, 0.0
      %v1307 = vadd.f32 %v1305, %v1306
      %1308 = vadd.xlane.f32.xlu0 %v1307
      %v1309 = vpop.xlane.xlu0 %1308
      %v1310 = vsel %vm744, %v345, 0.0
      %v1311 = vsel %vm744, %v601, 0.0
      %v1312 = vadd.f32 %v1310, %v1311
      %1313 = vadd.xlane.f32.xlu0 %v1312
      %v1314 = vpop.xlane.xlu0 %1313
      %v1315 = vsel %vm744, %v346, 0.0
      %v1316 = vsel %vm744, %v602, 0.0
      %v1317 = vadd.f32 %v1315, %v1316
      %1318 = vadd.xlane.f32.xlu0 %v1317
      %v1319 = vpop.xlane.xlu0 %1318
      %v1320 = vsel %vm744, %v347, 0.0
      %v1321 = vsel %vm744, %v603, 0.0
      %v1322 = vadd.f32 %v1320, %v1321
      %1323 = vadd.xlane.f32.xlu0 %v1322
      %v1324 = vpop.xlane.xlu0 %1323
      %v1325 = vsel %vm744, %v348, 0.0
      %v1326 = vsel %vm744, %v604, 0.0
      %v1327 = vadd.f32 %v1325, %v1326
      %1328 = vadd.xlane.f32.xlu0 %v1327
      %v1329 = vpop.xlane.xlu0 %1328
      %v1330 = vsel %vm744, %v349, 0.0
      %v1331 = vsel %vm744, %v605, 0.0
      %v1332 = vadd.f32 %v1330, %v1331
      %1333 = vadd.xlane.f32.xlu0 %v1332
      %v1334 = vpop.xlane.xlu0 %1333
      %v1335 = vsel %vm744, %v350, 0.0
      %v1336 = vsel %vm744, %v606, 0.0
      %v1337 = vadd.f32 %v1335, %v1336
      %1338 = vadd.xlane.f32.xlu0 %v1337
      %v1339 = vpop.xlane.xlu0 %1338
      %v1340 = vsel %vm744, %v351, 0.0
      %v1341 = vsel %vm744, %v607, 0.0
      %v1342 = vadd.f32 %v1340, %v1341
      %1343 = vadd.xlane.f32.xlu0 %v1342
      %v1344 = vpop.xlane.xlu0 %1343
      %v1345 = vsel %vm744, %v352, 0.0
      %v1346 = vsel %vm744, %v608, 0.0
      %v1347 = vadd.f32 %v1345, %v1346
      %1348 = vadd.xlane.f32.xlu0 %v1347
      %v1349 = vpop.xlane.xlu0 %1348
      %v1350 = vsel %vm744, %v353, 0.0
      %v1351 = vsel %vm744, %v609, 0.0
      %v1352 = vadd.f32 %v1350, %v1351
      %1353 = vadd.xlane.f32.xlu0 %v1352
      %v1354 = vpop.xlane.xlu0 %1353
      %v1355 = vsel %vm744, %v354, 0.0
      %v1356 = vsel %vm744, %v610, 0.0
      %v1357 = vadd.f32 %v1355, %v1356
      %1358 = vadd.xlane.f32.xlu0 %v1357
      %v1359 = vpop.xlane.xlu0 %1358
      %v1360 = vsel %vm744, %v355, 0.0
      %v1361 = vsel %vm744, %v611, 0.0
      %v1362 = vadd.f32 %v1360, %v1361
      %1363 = vadd.xlane.f32.xlu0 %v1362
      %v1364 = vpop.xlane.xlu0 %1363
      %v1365 = vsel %vm744, %v356, 0.0
      %v1366 = vsel %vm744, %v612, 0.0
      %v1367 = vadd.f32 %v1365, %v1366
      %1368 = vadd.xlane.f32.xlu0 %v1367
      %v1369 = vpop.xlane.xlu0 %1368
      %v1370 = vsel %vm744, %v357, 0.0
      %v1371 = vsel %vm744, %v613, 0.0
      %v1372 = vadd.f32 %v1370, %v1371
      %1373 = vadd.xlane.f32.xlu0 %v1372
      %v1374 = vpop.xlane.xlu0 %1373
      %v1375 = vsel %vm744, %v358, 0.0
      %v1376 = vsel %vm744, %v614, 0.0
      %v1377 = vadd.f32 %v1375, %v1376
      %1378 = vadd.xlane.f32.xlu0 %v1377
      %v1379 = vpop.xlane.xlu0 %1378
      %v1380 = vsel %vm744, %v359, 0.0
      %v1381 = vsel %vm744, %v615, 0.0
      %v1382 = vadd.f32 %v1380, %v1381
      %1383 = vadd.xlane.f32.xlu0 %v1382
      %v1384 = vpop.xlane.xlu0 %1383
      %v1385 = vrcp.pop 256.0
      %v1386 = vmul.f32 %v749, %v1385
      %v1387 = vmul.f32 %v754, %v1385
      %v1388 = vmul.f32 %v759, %v1385
      %v1389 = vmul.f32 %v764, %v1385
      %v1390 = vmul.f32 %v769, %v1385
      %v1391 = vmul.f32 %v774, %v1385
      %v1392 = vmul.f32 %v779, %v1385
      %v1393 = vmul.f32 %v784, %v1385
      %v1394 = vmul.f32 %v789, %v1385
      %v1395 = vmul.f32 %v794, %v1385
      %v1396 = vmul.f32 %v799, %v1385
      %v1397 = vmul.f32 %v804, %v1385
      %v1398 = vmul.f32 %v809, %v1385
      %v1399 = vmul.f32 %v814, %v1385
      %v1400 = vmul.f32 %v819, %v1385
      %v1401 = vmul.f32 %v824, %v1385
      %v1402 = vmul.f32 %v829, %v1385
      %v1403 = vmul.f32 %v834, %v1385
      %v1404 = vmul.f32 %v839, %v1385
      %v1405 = vmul.f32 %v844, %v1385
      %v1406 = vmul.f32 %v849, %v1385
      %v1407 = vmul.f32 %v854, %v1385
      %v1408 = vmul.f32 %v859, %v1385
      %v1409 = vmul.f32 %v864, %v1385
      %v1410 = vmul.f32 %v869, %v1385
      %v1411 = vmul.f32 %v874, %v1385
      %v1412 = vmul.f32 %v879, %v1385
      %v1413 = vmul.f32 %v884, %v1385
      %v1414 = vmul.f32 %v889, %v1385
      %v1415 = vmul.f32 %v894, %v1385
      %v1416 = vmul.f32 %v899, %v1385
      %v1417 = vmul.f32 %v904, %v1385
      %v1418 = vmul.f32 %v909, %v1385
      %v1419 = vmul.f32 %v914, %v1385
      %v1420 = vmul.f32 %v919, %v1385
      %v1421 = vmul.f32 %v924, %v1385
      %v1422 = vmul.f32 %v929, %v1385
      %v1423 = vmul.f32 %v934, %v1385
      %v1424 = vmul.f32 %v939, %v1385
      %v1425 = vmul.f32 %v944, %v1385
      %v1426 = vmul.f32 %v949, %v1385
      %v1427 = vmul.f32 %v954, %v1385
      %v1428 = vmul.f32 %v959, %v1385
      %v1429 = vmul.f32 %v964, %v1385
      %v1430 = vmul.f32 %v969, %v1385
      %v1431 = vmul.f32 %v974, %v1385
      %v1432 = vmul.f32 %v979, %v1385
      %v1433 = vmul.f32 %v984, %v1385
      %v1434 = vmul.f32 %v989, %v1385
      %v1435 = vmul.f32 %v994, %v1385
      %v1436 = vmul.f32 %v999, %v1385
      %v1437 = vmul.f32 %v1004, %v1385
      %v1438 = vmul.f32 %v1009, %v1385
      %v1439 = vmul.f32 %v1014, %v1385
      %v1440 = vmul.f32 %v1019, %v1385
      %v1441 = vmul.f32 %v1024, %v1385
      %v1442 = vmul.f32 %v1029, %v1385
      %v1443 = vmul.f32 %v1034, %v1385
      %v1444 = vmul.f32 %v1039, %v1385
      %v1445 = vmul.f32 %v1044, %v1385
      %v1446 = vmul.f32 %v1049, %v1385
      %v1447 = vmul.f32 %v1054, %v1385
      %v1448 = vmul.f32 %v1059, %v1385
      %v1449 = vmul.f32 %v1064, %v1385
      %v1450 = vmul.f32 %v1069, %v1385
      %v1451 = vmul.f32 %v1074, %v1385
      %v1452 = vmul.f32 %v1079, %v1385
      %v1453 = vmul.f32 %v1084, %v1385
      %v1454 = vmul.f32 %v1089, %v1385
      %v1455 = vmul.f32 %v1094, %v1385
      %v1456 = vmul.f32 %v1099, %v1385
      %v1457 = vmul.f32 %v1104, %v1385
      %v1458 = vmul.f32 %v1109, %v1385
      %v1459 = vmul.f32 %v1114, %v1385
      %v1460 = vmul.f32 %v1119, %v1385
      %v1461 = vmul.f32 %v1124, %v1385
      %v1462 = vmul.f32 %v1129, %v1385
      %v1463 = vmul.f32 %v1134, %v1385
      %v1464 = vmul.f32 %v1139, %v1385
      %v1465 = vmul.f32 %v1144, %v1385
      %v1466 = vmul.f32 %v1149, %v1385
      %v1467 = vmul.f32 %v1154, %v1385
      %v1468 = vmul.f32 %v1159, %v1385
      %v1469 = vmul.f32 %v1164, %v1385
      %v1470 = vmul.f32 %v1169, %v1385
      %v1471 = vmul.f32 %v1174, %v1385
      %v1472 = vmul.f32 %v1179, %v1385
      %v1473 = vmul.f32 %v1184, %v1385
      %v1474 = vmul.f32 %v1189, %v1385
      %v1475 = vmul.f32 %v1194, %v1385
      %v1476 = vmul.f32 %v1199, %v1385
      %v1477 = vmul.f32 %v1204, %v1385
      %v1478 = vmul.f32 %v1209, %v1385
      %v1479 = vmul.f32 %v1214, %v1385
      %v1480 = vmul.f32 %v1219, %v1385
      %v1481 = vmul.f32 %v1224, %v1385
      %v1482 = vmul.f32 %v1229, %v1385
      %v1483 = vmul.f32 %v1234, %v1385
      %v1484 = vmul.f32 %v1239, %v1385
      %v1485 = vmul.f32 %v1244, %v1385
      %v1486 = vmul.f32 %v1249, %v1385
      %v1487 = vmul.f32 %v1254, %v1385
      %v1488 = vmul.f32 %v1259, %v1385
      %v1489 = vmul.f32 %v1264, %v1385
      %v1490 = vmul.f32 %v1269, %v1385
      %v1491 = vmul.f32 %v1274, %v1385
      %v1492 = vmul.f32 %v1279, %v1385
      %v1493 = vmul.f32 %v1284, %v1385
      %v1494 = vmul.f32 %v1289, %v1385
      %v1495 = vmul.f32 %v1294, %v1385
      %v1496 = vmul.f32 %v1299, %v1385
      %v1497 = vmul.f32 %v1304, %v1385
      %v1498 = vmul.f32 %v1309, %v1385
      %v1499 = vmul.f32 %v1314, %v1385
      %v1500 = vmul.f32 %v1319, %v1385
      %v1501 = vmul.f32 %v1324, %v1385
      %v1502 = vmul.f32 %v1329, %v1385
      %v1503 = vmul.f32 %v1334, %v1385
      %v1504 = vmul.f32 %v1339, %v1385
      %v1505 = vmul.f32 %v1344, %v1385
      %v1506 = vmul.f32 %v1349, %v1385
      %v1507 = vmul.f32 %v1354, %v1385
      %v1508 = vmul.f32 %v1359, %v1385
      %v1509 = vmul.f32 %v1364, %v1385
      %v1510 = vmul.f32 %v1369, %v1385
      %v1511 = vmul.f32 %v1374, %v1385
      %v1512 = vmul.f32 %v1379, %v1385
      %v1513 = vmul.f32 %v1384, %v1385
      %v1514 = vpack.c.bf16 %v1386, %v1386
      %v1515 = vpack.c.bf16 %v1387, %v1387
      %v1516 = vpack.c.bf16 %v1388, %v1388
      %v1517 = vpack.c.bf16 %v1389, %v1389
      %v1518 = vpack.c.bf16 %v1390, %v1390
      %v1519 = vpack.c.bf16 %v1391, %v1391
      %v1520 = vpack.c.bf16 %v1392, %v1392
      %v1521 = vpack.c.bf16 %v1393, %v1393
      %v1522 = vpack.c.bf16 %v1394, %v1394
      %v1523 = vpack.c.bf16 %v1395, %v1395
      %v1524 = vpack.c.bf16 %v1396, %v1396
      %v1525 = vpack.c.bf16 %v1397, %v1397
      %v1526 = vpack.c.bf16 %v1398, %v1398
      %v1527 = vpack.c.bf16 %v1399, %v1399
      %v1528 = vpack.c.bf16 %v1400, %v1400
      %v1529 = vpack.c.bf16 %v1401, %v1401
      %v1530 = vpack.c.bf16 %v1402, %v1402
      %v1531 = vpack.c.bf16 %v1403, %v1403
      %v1532 = vpack.c.bf16 %v1404, %v1404
      %v1533 = vpack.c.bf16 %v1405, %v1405
      %v1534 = vpack.c.bf16 %v1406, %v1406
      %v1535 = vpack.c.bf16 %v1407, %v1407
      %v1536 = vpack.c.bf16 %v1408, %v1408
      %v1537 = vpack.c.bf16 %v1409, %v1409
      %v1538 = vpack.c.bf16 %v1410, %v1410
      %v1539 = vpack.c.bf16 %v1411, %v1411
      %v1540 = vpack.c.bf16 %v1412, %v1412
      %v1541 = vpack.c.bf16 %v1413, %v1413
      %v1542 = vpack.c.bf16 %v1414, %v1414
      %v1543 = vpack.c.bf16 %v1415, %v1415
      %v1544 = vpack.c.bf16 %v1416, %v1416
      %v1545 = vpack.c.bf16 %v1417, %v1417
      %v1546 = vpack.c.bf16 %v1418, %v1418
      %v1547 = vpack.c.bf16 %v1419, %v1419
      %v1548 = vpack.c.bf16 %v1420, %v1420
      %v1549 = vpack.c.bf16 %v1421, %v1421
      %v1550 = vpack.c.bf16 %v1422, %v1422
      %v1551 = vpack.c.bf16 %v1423, %v1423
      %v1552 = vpack.c.bf16 %v1424, %v1424
      %v1553 = vpack.c.bf16 %v1425, %v1425
      %v1554 = vpack.c.bf16 %v1426, %v1426
      %v1555 = vpack.c.bf16 %v1427, %v1427
      %v1556 = vpack.c.bf16 %v1428, %v1428
      %v1557 = vpack.c.bf16 %v1429, %v1429
      %v1558 = vpack.c.bf16 %v1430, %v1430
      %v1559 = vpack.c.bf16 %v1431, %v1431
      %v1560 = vpack.c.bf16 %v1432, %v1432
      %v1561 = vpack.c.bf16 %v1433, %v1433
      %v1562 = vpack.c.bf16 %v1434, %v1434
      %v1563 = vpack.c.bf16 %v1435, %v1435
      %v1564 = vpack.c.bf16 %v1436, %v1436
      %v1565 = vpack.c.bf16 %v1437, %v1437
      %v1566 = vpack.c.bf16 %v1438, %v1438
      %v1567 = vpack.c.bf16 %v1439, %v1439
      %v1568 = vpack.c.bf16 %v1440, %v1440
      %v1569 = vpack.c.bf16 %v1441, %v1441
      %v1570 = vpack.c.bf16 %v1442, %v1442
      %v1571 = vpack.c.bf16 %v1443, %v1443
      %v1572 = vpack.c.bf16 %v1444, %v1444
      %v1573 = vpack.c.bf16 %v1445, %v1445
      %v1574 = vpack.c.bf16 %v1446, %v1446
      %v1575 = vpack.c.bf16 %v1447, %v1447
      %v1576 = vpack.c.bf16 %v1448, %v1448
      %v1577 = vpack.c.bf16 %v1449, %v1449
      %v1578 = vpack.c.bf16 %v1450, %v1450
      %v1579 = vpack.c.bf16 %v1451, %v1451
      %v1580 = vpack.c.bf16 %v1452, %v1452
      %v1581 = vpack.c.bf16 %v1453, %v1453
      %v1582 = vpack.c.bf16 %v1454, %v1454
      %v1583 = vpack.c.bf16 %v1455, %v1455
      %v1584 = vpack.c.bf16 %v1456, %v1456
      %v1585 = vpack.c.bf16 %v1457, %v1457
      %v1586 = vpack.c.bf16 %v1458, %v1458
      %v1587 = vpack.c.bf16 %v1459, %v1459
      %v1588 = vpack.c.bf16 %v1460, %v1460
      %v1589 = vpack.c.bf16 %v1461, %v1461
      %v1590 = vpack.c.bf16 %v1462, %v1462
      %v1591 = vpack.c.bf16 %v1463, %v1463
      %v1592 = vpack.c.bf16 %v1464, %v1464
      %v1593 = vpack.c.bf16 %v1465, %v1465
      %v1594 = vpack.c.bf16 %v1466, %v1466
      %v1595 = vpack.c.bf16 %v1467, %v1467
      %v1596 = vpack.c.bf16 %v1468, %v1468
      %v1597 = vpack.c.bf16 %v1469, %v1469
      %v1598 = vpack.c.bf16 %v1470, %v1470
      %v1599 = vpack.c.bf16 %v1471, %v1471
      %v1600 = vpack.c.bf16 %v1472, %v1472
      %v1601 = vpack.c.bf16 %v1473, %v1473
      %v1602 = vpack.c.bf16 %v1474, %v1474
      %v1603 = vpack.c.bf16 %v1475, %v1475
      %v1604 = vpack.c.bf16 %v1476, %v1476
      %v1605 = vpack.c.bf16 %v1477, %v1477
      %v1606 = vpack.c.bf16 %v1478, %v1478
      %v1607 = vpack.c.bf16 %v1479, %v1479
      %v1608 = vpack.c.bf16 %v1480, %v1480
      %v1609 = vpack.c.bf16 %v1481, %v1481
      %v1610 = vpack.c.bf16 %v1482, %v1482
      %v1611 = vpack.c.bf16 %v1483, %v1483
      %v1612 = vpack.c.bf16 %v1484, %v1484
      %v1613 = vpack.c.bf16 %v1485, %v1485
      %v1614 = vpack.c.bf16 %v1486, %v1486
      %v1615 = vpack.c.bf16 %v1487, %v1487
      %v1616 = vpack.c.bf16 %v1488, %v1488
      %v1617 = vpack.c.bf16 %v1489, %v1489
      %v1618 = vpack.c.bf16 %v1490, %v1490
      %v1619 = vpack.c.bf16 %v1491, %v1491
      %v1620 = vpack.c.bf16 %v1492, %v1492
      %v1621 = vpack.c.bf16 %v1493, %v1493
      %v1622 = vpack.c.bf16 %v1494, %v1494
      %v1623 = vpack.c.bf16 %v1495, %v1495
      %v1624 = vpack.c.bf16 %v1496, %v1496
      %v1625 = vpack.c.bf16 %v1497, %v1497
      %v1626 = vpack.c.bf16 %v1498, %v1498
      %v1627 = vpack.c.bf16 %v1499, %v1499
      %v1628 = vpack.c.bf16 %v1500, %v1500
      %v1629 = vpack.c.bf16 %v1501, %v1501
      %v1630 = vpack.c.bf16 %v1502, %v1502
      %v1631 = vpack.c.bf16 %v1503, %v1503
      %v1632 = vpack.c.bf16 %v1504, %v1504
      %v1633 = vpack.c.bf16 %v1505, %v1505
      %v1634 = vpack.c.bf16 %v1506, %v1506
      %v1635 = vpack.c.bf16 %v1507, %v1507
      %v1636 = vpack.c.bf16 %v1508, %v1508
      %v1637 = vpack.c.bf16 %v1509, %v1509
      %v1638 = vpack.c.bf16 %v1510, %v1510
      %v1639 = vpack.c.bf16 %v1511, %v1511
      %v1640 = vpack.c.bf16 %v1512, %v1512
      %v1641 = vpack.c.bf16 %v1513, %v1513
      %v1642 = vld [vmem:[%s1] sm:$0x3]
      %v1643 = vld [vmem:[%s2] sm:$0x1]
      %v1645 = vlaneseq
      %v1646 = vshrl.u32 %v1645, 7
      %v1647 = vsub.s32 0, %v1646
      %v1648 = vrot.slane %v1643, %v1647
      %v1778 = vunpack.c.l.b16 %v1514
      %v1779 = vunpack.c.l.b16 %v1515
      %v1780 = vunpack.c.l.b16 %v1516
      %v1781 = vunpack.c.l.b16 %v1517
      %v1782 = vunpack.c.l.b16 %v1518
      %v1783 = vunpack.c.l.b16 %v1519
      %v1784 = vunpack.c.l.b16 %v1520
      %v1785 = vunpack.c.l.b16 %v1521
      %v1786 = vunpack.c.l.b16 %v1522
      %v1787 = vunpack.c.l.b16 %v1523
      %v1788 = vunpack.c.l.b16 %v1524
      %v1789 = vunpack.c.l.b16 %v1525
      %v1790 = vunpack.c.l.b16 %v1526
      %v1791 = vunpack.c.l.b16 %v1527
      %v1792 = vunpack.c.l.b16 %v1528
      %v1793 = vunpack.c.l.b16 %v1529
      %v1794 = vunpack.c.l.b16 %v1530
      %v1795 = vunpack.c.l.b16 %v1531
      %v1796 = vunpack.c.l.b16 %v1532
      %v1797 = vunpack.c.l.b16 %v1533
      %v1798 = vunpack.c.l.b16 %v1534
      %v1799 = vunpack.c.l.b16 %v1535
      %v1800 = vunpack.c.l.b16 %v1536
      %v1801 = vunpack.c.l.b16 %v1537
      %v1802 = vunpack.c.l.b16 %v1538
      %v1803 = vunpack.c.l.b16 %v1539
      %v1804 = vunpack.c.l.b16 %v1540
      %v1805 = vunpack.c.l.b16 %v1541
      %v1806 = vunpack.c.l.b16 %v1542
      %v1807 = vunpack.c.l.b16 %v1543
      %v1808 = vunpack.c.l.b16 %v1544
      %v1809 = vunpack.c.l.b16 %v1545
      %v1810 = vunpack.c.l.b16 %v1546
      %v1811 = vunpack.c.l.b16 %v1547
      %v1812 = vunpack.c.l.b16 %v1548
      %v1813 = vunpack.c.l.b16 %v1549
      %v1814 = vunpack.c.l.b16 %v1550
      %v1815 = vunpack.c.l.b16 %v1551
      %v1816 = vunpack.c.l.b16 %v1552
      %v1817 = vunpack.c.l.b16 %v1553
      %v1818 = vunpack.c.l.b16 %v1554
      %v1819 = vunpack.c.l.b16 %v1555
      %v1820 = vunpack.c.l.b16 %v1556
      %v1821 = vunpack.c.l.b16 %v1557
      %v1822 = vunpack.c.l.b16 %v1558
      %v1823 = vunpack.c.l.b16 %v1559
      %v1824 = vunpack.c.l.b16 %v1560
      %v1825 = vunpack.c.l.b16 %v1561
      %v1826 = vunpack.c.l.b16 %v1562
      %v1827 = vunpack.c.l.b16 %v1563
      %v1828 = vunpack.c.l.b16 %v1564
      %v1829 = vunpack.c.l.b16 %v1565
      %v1830 = vunpack.c.l.b16 %v1566
      %v1831 = vunpack.c.l.b16 %v1567
      %v1832 = vunpack.c.l.b16 %v1568
      %v1833 = vunpack.c.l.b16 %v1569
      %v1834 = vunpack.c.l.b16 %v1570
      %v1835 = vunpack.c.l.b16 %v1571
      %v1836 = vunpack.c.l.b16 %v1572
      %v1837 = vunpack.c.l.b16 %v1573
      %v1838 = vunpack.c.l.b16 %v1574
      %v1839 = vunpack.c.l.b16 %v1575
      %v1840 = vunpack.c.l.b16 %v1576
      %v1841 = vunpack.c.l.b16 %v1577
      %v1842 = vunpack.c.l.b16 %v1578
      %v1843 = vunpack.c.l.b16 %v1579
      %v1844 = vunpack.c.l.b16 %v1580
      %v1845 = vunpack.c.l.b16 %v1581
      %v1846 = vunpack.c.l.b16 %v1582
      %v1847 = vunpack.c.l.b16 %v1583
      %v1848 = vunpack.c.l.b16 %v1584
      %v1849 = vunpack.c.l.b16 %v1585
      %v1850 = vunpack.c.l.b16 %v1586
      %v1851 = vunpack.c.l.b16 %v1587
      %v1852 = vunpack.c.l.b16 %v1588
      %v1853 = vunpack.c.l.b16 %v1589
      %v1854 = vunpack.c.l.b16 %v1590
      %v1855 = vunpack.c.l.b16 %v1591
      %v1856 = vunpack.c.l.b16 %v1592
      %v1857 = vunpack.c.l.b16 %v1593
      %v1858 = vunpack.c.l.b16 %v1594
      %v1859 = vunpack.c.l.b16 %v1595
      %v1860 = vunpack.c.l.b16 %v1596
      %v1861 = vunpack.c.l.b16 %v1597
      %v1862 = vunpack.c.l.b16 %v1598
      %v1863 = vunpack.c.l.b16 %v1599
      %v1864 = vunpack.c.l.b16 %v1600
      %v1865 = vunpack.c.l.b16 %v1601
      %v1866 = vunpack.c.l.b16 %v1602
      %v1867 = vunpack.c.l.b16 %v1603
      %v1868 = vunpack.c.l.b16 %v1604
      %v1869 = vunpack.c.l.b16 %v1605
      %v1870 = vunpack.c.l.b16 %v1606
      %v1871 = vunpack.c.l.b16 %v1607
      %v1872 = vunpack.c.l.b16 %v1608
      %v1873 = vunpack.c.l.b16 %v1609
      %v1874 = vunpack.c.l.b16 %v1610
      %v1875 = vunpack.c.l.b16 %v1611
      %v1876 = vunpack.c.l.b16 %v1612
      %v1877 = vunpack.c.l.b16 %v1613
      %v1878 = vunpack.c.l.b16 %v1614
      %v1879 = vunpack.c.l.b16 %v1615
      %v1880 = vunpack.c.l.b16 %v1616
      %v1881 = vunpack.c.l.b16 %v1617
      %v1882 = vunpack.c.l.b16 %v1618
      %v1883 = vunpack.c.l.b16 %v1619
      %v1884 = vunpack.c.l.b16 %v1620
      %v1885 = vunpack.c.l.b16 %v1621
      %v1886 = vunpack.c.l.b16 %v1622
      %v1887 = vunpack.c.l.b16 %v1623
      %v1888 = vunpack.c.l.b16 %v1624
      %v1889 = vunpack.c.l.b16 %v1625
      %v1890 = vunpack.c.l.b16 %v1626
      %v1891 = vunpack.c.l.b16 %v1627
      %v1892 = vunpack.c.l.b16 %v1628
      %v1893 = vunpack.c.l.b16 %v1629
      %v1894 = vunpack.c.l.b16 %v1630
      %v1895 = vunpack.c.l.b16 %v1631
      %v1896 = vunpack.c.l.b16 %v1632
      %v1897 = vunpack.c.l.b16 %v1633
      %v1898 = vunpack.c.l.b16 %v1634
      %v1899 = vunpack.c.l.b16 %v1635
      %v1900 = vunpack.c.l.b16 %v1636
      %v1901 = vunpack.c.l.b16 %v1637
      %v1902 = vunpack.c.l.b16 %v1638
      %v1903 = vunpack.c.l.b16 %v1639
      %v1904 = vunpack.c.l.b16 %v1640
      %v1905 = vunpack.c.l.b16 %v1641
      %v1906 = vlaneseq
      %v1907 = vand.u32 %v1906, 127
      %v1908 = vlaneseq
      %v1909 = vshrl.u32 %v1908, 7
      %v1910 = vsub.s32 %v1907, %v1909
      %v1911 = vrot.slane %v1778, %v1910
      %v1912 = vlaneseq
      %v1913 = vshrl.u32 %v1912, 7
      %v1914 = vsub.s32 %v1907, %v1913
      %v1915 = vrot.slane %v1779, %v1914
      %v1916 = vlaneseq
      %v1917 = vshrl.u32 %v1916, 7
      %v1918 = vsub.s32 %v1907, %v1917
      %v1919 = vrot.slane %v1780, %v1918
      %v1920 = vlaneseq
      %v1921 = vshrl.u32 %v1920, 7
      %v1922 = vsub.s32 %v1907, %v1921
      %v1923 = vrot.slane %v1781, %v1922
      %v1924 = vlaneseq
      %v1925 = vshrl.u32 %v1924, 7
      %v1926 = vsub.s32 %v1907, %v1925
      %v1927 = vrot.slane %v1782, %v1926
      %v1928 = vlaneseq
      %v1929 = vshrl.u32 %v1928, 7
      %v1930 = vsub.s32 %v1907, %v1929
      %v1931 = vrot.slane %v1783, %v1930
      %v1932 = vlaneseq
      %v1933 = vshrl.u32 %v1932, 7
      %v1934 = vsub.s32 %v1907, %v1933
      %v1935 = vrot.slane %v1784, %v1934
      %v1936 = vlaneseq
      %v1937 = vshrl.u32 %v1936, 7
      %v1938 = vsub.s32 %v1907, %v1937
      %v1939 = vrot.slane %v1785, %v1938
      %v1940 = vlaneseq
      %v1941 = vshrl.u32 %v1940, 7
      %v1942 = vsub.s32 %v1907, %v1941
      %v1943 = vrot.slane %v1786, %v1942
      %v1944 = vlaneseq
      %v1945 = vshrl.u32 %v1944, 7
      %v1946 = vsub.s32 %v1907, %v1945
      %v1947 = vrot.slane %v1787, %v1946
      %v1948 = vlaneseq
      %v1949 = vshrl.u32 %v1948, 7
      %v1950 = vsub.s32 %v1907, %v1949
      %v1951 = vrot.slane %v1788, %v1950
      %v1952 = vlaneseq
      %v1953 = vshrl.u32 %v1952, 7
      %v1954 = vsub.s32 %v1907, %v1953
      %v1955 = vrot.slane %v1789, %v1954
      %v1956 = vlaneseq
      %v1957 = vshrl.u32 %v1956, 7
      %v1958 = vsub.s32 %v1907, %v1957
      %v1959 = vrot.slane %v1790, %v1958
      %v1960 = vlaneseq
      %v1961 = vshrl.u32 %v1960, 7
      %v1962 = vsub.s32 %v1907, %v1961
      %v1963 = vrot.slane %v1791, %v1962
      %v1964 = vlaneseq
      %v1965 = vshrl.u32 %v1964, 7
      %v1966 = vsub.s32 %v1907, %v1965
      %v1967 = vrot.slane %v1792, %v1966
      %v1968 = vlaneseq
      %v1969 = vshrl.u32 %v1968, 7
      %v1970 = vsub.s32 %v1907, %v1969
      %v1971 = vrot.slane %v1793, %v1970
      %v1972 = vlaneseq
      %v1973 = vshrl.u32 %v1972, 7
      %v1974 = vsub.s32 %v1907, %v1973
      %v1975 = vrot.slane %v1794, %v1974
      %v1976 = vlaneseq
      %v1977 = vshrl.u32 %v1976, 7
      %v1978 = vsub.s32 %v1907, %v1977
      %v1979 = vrot.slane %v1795, %v1978
      %v1980 = vlaneseq
      %v1981 = vshrl.u32 %v1980, 7
      %v1982 = vsub.s32 %v1907, %v1981
      %v1983 = vrot.slane %v1796, %v1982
      %v1984 = vlaneseq
      %v1985 = vshrl.u32 %v1984, 7
      %v1986 = vsub.s32 %v1907, %v1985
      %v1987 = vrot.slane %v1797, %v1986
      %v1988 = vlaneseq
      %v1989 = vshrl.u32 %v1988, 7
      %v1990 = vsub.s32 %v1907, %v1989
      %v1991 = vrot.slane %v1798, %v1990
      %v1992 = vlaneseq
      %v1993 = vshrl.u32 %v1992, 7
      %v1994 = vsub.s32 %v1907, %v1993
      %v1995 = vrot.slane %v1799, %v1994
      %v1996 = vlaneseq
      %v1997 = vshrl.u32 %v1996, 7
      %v1998 = vsub.s32 %v1907, %v1997
      %v1999 = vrot.slane %v1800, %v1998
      %v2000 = vlaneseq
      %v2001 = vshrl.u32 %v2000, 7
      %v2002 = vsub.s32 %v1907, %v2001
      %v2003 = vrot.slane %v1801, %v2002
      %v2004 = vlaneseq
      %v2005 = vshrl.u32 %v2004, 7
      %v2006 = vsub.s32 %v1907, %v2005
      %v2007 = vrot.slane %v1802, %v2006
      %v2008 = vlaneseq
      %v2009 = vshrl.u32 %v2008, 7
      %v2010 = vsub.s32 %v1907, %v2009
      %v2011 = vrot.slane %v1803, %v2010
      %v2012 = vlaneseq
      %v2013 = vshrl.u32 %v2012, 7
      %v2014 = vsub.s32 %v1907, %v2013
      %v2015 = vrot.slane %v1804, %v2014
      %v2016 = vlaneseq
      %v2017 = vshrl.u32 %v2016, 7
      %v2018 = vsub.s32 %v1907, %v2017
      %v2019 = vrot.slane %v1805, %v2018
      %v2020 = vlaneseq
      %v2021 = vshrl.u32 %v2020, 7
      %v2022 = vsub.s32 %v1907, %v2021
      %v2023 = vrot.slane %v1806, %v2022
      %v2024 = vlaneseq
      %v2025 = vshrl.u32 %v2024, 7
      %v2026 = vsub.s32 %v1907, %v2025
      %v2027 = vrot.slane %v1807, %v2026
      %v2028 = vlaneseq
      %v2029 = vshrl.u32 %v2028, 7
      %v2030 = vsub.s32 %v1907, %v2029
      %v2031 = vrot.slane %v1808, %v2030
      %v2032 = vlaneseq
      %v2033 = vshrl.u32 %v2032, 7
      %v2034 = vsub.s32 %v1907, %v2033
      %v2035 = vrot.slane %v1809, %v2034
      %v2036 = vlaneseq
      %v2037 = vshrl.u32 %v2036, 7
      %v2038 = vsub.s32 %v1907, %v2037
      %v2039 = vrot.slane %v1810, %v2038
      %v2040 = vlaneseq
      %v2041 = vshrl.u32 %v2040, 7
      %v2042 = vsub.s32 %v1907, %v2041
      %v2043 = vrot.slane %v1811, %v2042
      %v2044 = vlaneseq
      %v2045 = vshrl.u32 %v2044, 7
      %v2046 = vsub.s32 %v1907, %v2045
      %v2047 = vrot.slane %v1812, %v2046
      %v2048 = vlaneseq
      %v2049 = vshrl.u32 %v2048, 7
      %v2050 = vsub.s32 %v1907, %v2049
      %v2051 = vrot.slane %v1813, %v2050
      %v2052 = vlaneseq
      %v2053 = vshrl.u32 %v2052, 7
      %v2054 = vsub.s32 %v1907, %v2053
      %v2055 = vrot.slane %v1814, %v2054
      %v2056 = vlaneseq
      %v2057 = vshrl.u32 %v2056, 7
      %v2058 = vsub.s32 %v1907, %v2057
      %v2059 = vrot.slane %v1815, %v2058
      %v2060 = vlaneseq
      %v2061 = vshrl.u32 %v2060, 7
      %v2062 = vsub.s32 %v1907, %v2061
      %v2063 = vrot.slane %v1816, %v2062
      %v2064 = vlaneseq
      %v2065 = vshrl.u32 %v2064, 7
      %v2066 = vsub.s32 %v1907, %v2065
      %v2067 = vrot.slane %v1817, %v2066
      %v2068 = vlaneseq
      %v2069 = vshrl.u32 %v2068, 7
      %v2070 = vsub.s32 %v1907, %v2069
      %v2071 = vrot.slane %v1818, %v2070
      %v2072 = vlaneseq
      %v2073 = vshrl.u32 %v2072, 7
      %v2074 = vsub.s32 %v1907, %v2073
      %v2075 = vrot.slane %v1819, %v2074
      %v2076 = vlaneseq
      %v2077 = vshrl.u32 %v2076, 7
      %v2078 = vsub.s32 %v1907, %v2077
      %v2079 = vrot.slane %v1820, %v2078
      %v2080 = vlaneseq
      %v2081 = vshrl.u32 %v2080, 7
      %v2082 = vsub.s32 %v1907, %v2081
      %v2083 = vrot.slane %v1821, %v2082
      %v2084 = vlaneseq
      %v2085 = vshrl.u32 %v2084, 7
      %v2086 = vsub.s32 %v1907, %v2085
      %v2087 = vrot.slane %v1822, %v2086
      %v2088 = vlaneseq
      %v2089 = vshrl.u32 %v2088, 7
      %v2090 = vsub.s32 %v1907, %v2089
      %v2091 = vrot.slane %v1823, %v2090
      %v2092 = vlaneseq
      %v2093 = vshrl.u32 %v2092, 7
      %v2094 = vsub.s32 %v1907, %v2093
      %v2095 = vrot.slane %v1824, %v2094
      %v2096 = vlaneseq
      %v2097 = vshrl.u32 %v2096, 7
      %v2098 = vsub.s32 %v1907, %v2097
      %v2099 = vrot.slane %v1825, %v2098
      %v2100 = vlaneseq
      %v2101 = vshrl.u32 %v2100, 7
      %v2102 = vsub.s32 %v1907, %v2101
      %v2103 = vrot.slane %v1826, %v2102
      %v2104 = vlaneseq
      %v2105 = vshrl.u32 %v2104, 7
      %v2106 = vsub.s32 %v1907, %v2105
      %v2107 = vrot.slane %v1827, %v2106
      %v2108 = vlaneseq
      %v2109 = vshrl.u32 %v2108, 7
      %v2110 = vsub.s32 %v1907, %v2109
      %v2111 = vrot.slane %v1828, %v2110
      %v2112 = vlaneseq
      %v2113 = vshrl.u32 %v2112, 7
      %v2114 = vsub.s32 %v1907, %v2113
      %v2115 = vrot.slane %v1829, %v2114
      %v2116 = vlaneseq
      %v2117 = vshrl.u32 %v2116, 7
      %v2118 = vsub.s32 %v1907, %v2117
      %v2119 = vrot.slane %v1830, %v2118
      %v2120 = vlaneseq
      %v2121 = vshrl.u32 %v2120, 7
      %v2122 = vsub.s32 %v1907, %v2121
      %v2123 = vrot.slane %v1831, %v2122
      %v2124 = vlaneseq
      %v2125 = vshrl.u32 %v2124, 7
      %v2126 = vsub.s32 %v1907, %v2125
      %v2127 = vrot.slane %v1832, %v2126
      %v2128 = vlaneseq
      %v2129 = vshrl.u32 %v2128, 7
      %v2130 = vsub.s32 %v1907, %v2129
      %v2131 = vrot.slane %v1833, %v2130
      %v2132 = vlaneseq
      %v2133 = vshrl.u32 %v2132, 7
      %v2134 = vsub.s32 %v1907, %v2133
      %v2135 = vrot.slane %v1834, %v2134
      %v2136 = vlaneseq
      %v2137 = vshrl.u32 %v2136, 7
      %v2138 = vsub.s32 %v1907, %v2137
      %v2139 = vrot.slane %v1835, %v2138
      %v2140 = vlaneseq
      %v2141 = vshrl.u32 %v2140, 7
      %v2142 = vsub.s32 %v1907, %v2141
      %v2143 = vrot.slane %v1836, %v2142
      %v2144 = vlaneseq
      %v2145 = vshrl.u32 %v2144, 7
      %v2146 = vsub.s32 %v1907, %v2145
      %v2147 = vrot.slane %v1837, %v2146
      %v2148 = vlaneseq
      %v2149 = vshrl.u32 %v2148, 7
      %v2150 = vsub.s32 %v1907, %v2149
      %v2151 = vrot.slane %v1838, %v2150
      %v2152 = vlaneseq
      %v2153 = vshrl.u32 %v2152, 7
      %v2154 = vsub.s32 %v1907, %v2153
      %v2155 = vrot.slane %v1839, %v2154
      %v2156 = vlaneseq
      %v2157 = vshrl.u32 %v2156, 7
      %v2158 = vsub.s32 %v1907, %v2157
      %v2159 = vrot.slane %v1840, %v2158
      %v2160 = vlaneseq
      %v2161 = vshrl.u32 %v2160, 7
      %v2162 = vsub.s32 %v1907, %v2161
      %v2163 = vrot.slane %v1841, %v2162
      %v2164 = vlaneseq
      %v2165 = vshrl.u32 %v2164, 7
      %v2166 = vsub.s32 %v1907, %v2165
      %v2167 = vrot.slane %v1842, %v2166
      %v2168 = vlaneseq
      %v2169 = vshrl.u32 %v2168, 7
      %v2170 = vsub.s32 %v1907, %v2169
      %v2171 = vrot.slane %v1843, %v2170
      %v2172 = vlaneseq
      %v2173 = vshrl.u32 %v2172, 7
      %v2174 = vsub.s32 %v1907, %v2173
      %v2175 = vrot.slane %v1844, %v2174
      %v2176 = vlaneseq
      %v2177 = vshrl.u32 %v2176, 7
      %v2178 = vsub.s32 %v1907, %v2177
      %v2179 = vrot.slane %v1845, %v2178
      %v2180 = vlaneseq
      %v2181 = vshrl.u32 %v2180, 7
      %v2182 = vsub.s32 %v1907, %v2181
      %v2183 = vrot.slane %v1846, %v2182
      %v2184 = vlaneseq
      %v2185 = vshrl.u32 %v2184, 7
      %v2186 = vsub.s32 %v1907, %v2185
      %v2187 = vrot.slane %v1847, %v2186
      %v2188 = vlaneseq
      %v2189 = vshrl.u32 %v2188, 7
      %v2190 = vsub.s32 %v1907, %v2189
      %v2191 = vrot.slane %v1848, %v2190
      %v2192 = vlaneseq
      %v2193 = vshrl.u32 %v2192, 7
      %v2194 = vsub.s32 %v1907, %v2193
      %v2195 = vrot.slane %v1849, %v2194
      %v2196 = vlaneseq
      %v2197 = vshrl.u32 %v2196, 7
      %v2198 = vsub.s32 %v1907, %v2197
      %v2199 = vrot.slane %v1850, %v2198
      %v2200 = vlaneseq
      %v2201 = vshrl.u32 %v2200, 7
      %v2202 = vsub.s32 %v1907, %v2201
      %v2203 = vrot.slane %v1851, %v2202
      %v2204 = vlaneseq
      %v2205 = vshrl.u32 %v2204, 7
      %v2206 = vsub.s32 %v1907, %v2205
      %v2207 = vrot.slane %v1852, %v2206
      %v2208 = vlaneseq
      %v2209 = vshrl.u32 %v2208, 7
      %v2210 = vsub.s32 %v1907, %v2209
      %v2211 = vrot.slane %v1853, %v2210
      %v2212 = vlaneseq
      %v2213 = vshrl.u32 %v2212, 7
      %v2214 = vsub.s32 %v1907, %v2213
      %v2215 = vrot.slane %v1854, %v2214
      %v2216 = vlaneseq
      %v2217 = vshrl.u32 %v2216, 7
      %v2218 = vsub.s32 %v1907, %v2217
      %v2219 = vrot.slane %v1855, %v2218
      %v2220 = vlaneseq
      %v2221 = vshrl.u32 %v2220, 7
      %v2222 = vsub.s32 %v1907, %v2221
      %v2223 = vrot.slane %v1856, %v2222
      %v2224 = vlaneseq
      %v2225 = vshrl.u32 %v2224, 7
      %v2226 = vsub.s32 %v1907, %v2225
      %v2227 = vrot.slane %v1857, %v2226
      %v2228 = vlaneseq
      %v2229 = vshrl.u32 %v2228, 7
      %v2230 = vsub.s32 %v1907, %v2229
      %v2231 = vrot.slane %v1858, %v2230
      %v2232 = vlaneseq
      %v2233 = vshrl.u32 %v2232, 7
      %v2234 = vsub.s32 %v1907, %v2233
      %v2235 = vrot.slane %v1859, %v2234
      %v2236 = vlaneseq
      %v2237 = vshrl.u32 %v2236, 7
      %v2238 = vsub.s32 %v1907, %v2237
      %v2239 = vrot.slane %v1860, %v2238
      %v2240 = vlaneseq
      %v2241 = vshrl.u32 %v2240, 7
      %v2242 = vsub.s32 %v1907, %v2241
      %v2243 = vrot.slane %v1861, %v2242
      %v2244 = vlaneseq
      %v2245 = vshrl.u32 %v2244, 7
      %v2246 = vsub.s32 %v1907, %v2245
      %v2247 = vrot.slane %v1862, %v2246
      %v2248 = vlaneseq
      %v2249 = vshrl.u32 %v2248, 7
      %v2250 = vsub.s32 %v1907, %v2249
      %v2251 = vrot.slane %v1863, %v2250
      %v2252 = vlaneseq
      %v2253 = vshrl.u32 %v2252, 7
      %v2254 = vsub.s32 %v1907, %v2253
      %v2255 = vrot.slane %v1864, %v2254
      %v2256 = vlaneseq
      %v2257 = vshrl.u32 %v2256, 7
      %v2258 = vsub.s32 %v1907, %v2257
      %v2259 = vrot.slane %v1865, %v2258
      %v2260 = vlaneseq
      %v2261 = vshrl.u32 %v2260, 7
      %v2262 = vsub.s32 %v1907, %v2261
      %v2263 = vrot.slane %v1866, %v2262
      %v2264 = vlaneseq
      %v2265 = vshrl.u32 %v2264, 7
      %v2266 = vsub.s32 %v1907, %v2265
      %v2267 = vrot.slane %v1867, %v2266
      %v2268 = vlaneseq
      %v2269 = vshrl.u32 %v2268, 7
      %v2270 = vsub.s32 %v1907, %v2269
      %v2271 = vrot.slane %v1868, %v2270
      %v2272 = vlaneseq
      %v2273 = vshrl.u32 %v2272, 7
      %v2274 = vsub.s32 %v1907, %v2273
      %v2275 = vrot.slane %v1869, %v2274
      %v2276 = vlaneseq
      %v2277 = vshrl.u32 %v2276, 7
      %v2278 = vsub.s32 %v1907, %v2277
      %v2279 = vrot.slane %v1870, %v2278
      %v2280 = vlaneseq
      %v2281 = vshrl.u32 %v2280, 7
      %v2282 = vsub.s32 %v1907, %v2281
      %v2283 = vrot.slane %v1871, %v2282
      %v2284 = vlaneseq
      %v2285 = vshrl.u32 %v2284, 7
      %v2286 = vsub.s32 %v1907, %v2285
      %v2287 = vrot.slane %v1872, %v2286
      %v2288 = vlaneseq
      %v2289 = vshrl.u32 %v2288, 7
      %v2290 = vsub.s32 %v1907, %v2289
      %v2291 = vrot.slane %v1873, %v2290
      %v2292 = vlaneseq
      %v2293 = vshrl.u32 %v2292, 7
      %v2294 = vsub.s32 %v1907, %v2293
      %v2295 = vrot.slane %v1874, %v2294
      %v2296 = vlaneseq
      %v2297 = vshrl.u32 %v2296, 7
      %v2298 = vsub.s32 %v1907, %v2297
      %v2299 = vrot.slane %v1875, %v2298
      %v2300 = vlaneseq
      %v2301 = vshrl.u32 %v2300, 7
      %v2302 = vsub.s32 %v1907, %v2301
      %v2303 = vrot.slane %v1876, %v2302
      %v2304 = vlaneseq
      %v2305 = vshrl.u32 %v2304, 7
      %v2306 = vsub.s32 %v1907, %v2305
      %v2307 = vrot.slane %v1877, %v2306
      %v2308 = vlaneseq
      %v2309 = vshrl.u32 %v2308, 7
      %v2310 = vsub.s32 %v1907, %v2309
      %v2311 = vrot.slane %v1878, %v2310
      %v2312 = vlaneseq
      %v2313 = vshrl.u32 %v2312, 7
      %v2314 = vsub.s32 %v1907, %v2313
      %v2315 = vrot.slane %v1879, %v2314
      %v2316 = vlaneseq
      %v2317 = vshrl.u32 %v2316, 7
      %v2318 = vsub.s32 %v1907, %v2317
      %v2319 = vrot.slane %v1880, %v2318
      %v2320 = vlaneseq
      %v2321 = vshrl.u32 %v2320, 7
      %v2322 = vsub.s32 %v1907, %v2321
      %v2323 = vrot.slane %v1881, %v2322
      %v2324 = vlaneseq
      %v2325 = vshrl.u32 %v2324, 7
      %v2326 = vsub.s32 %v1907, %v2325
      %v2327 = vrot.slane %v1882, %v2326
      %v2328 = vlaneseq
      %v2329 = vshrl.u32 %v2328, 7
      %v2330 = vsub.s32 %v1907, %v2329
      %v2331 = vrot.slane %v1883, %v2330
      %v2332 = vlaneseq
      %v2333 = vshrl.u32 %v2332, 7
      %v2334 = vsub.s32 %v1907, %v2333
      %v2335 = vrot.slane %v1884, %v2334
      %v2336 = vlaneseq
      %v2337 = vshrl.u32 %v2336, 7
      %v2338 = vsub.s32 %v1907, %v2337
      %v2339 = vrot.slane %v1885, %v2338
      %v2340 = vlaneseq
      %v2341 = vshrl.u32 %v2340, 7
      %v2342 = vsub.s32 %v1907, %v2341
      %v2343 = vrot.slane %v1886, %v2342
      %v2344 = vlaneseq
      %v2345 = vshrl.u32 %v2344, 7
      %v2346 = vsub.s32 %v1907, %v2345
      %v2347 = vrot.slane %v1887, %v2346
      %v2348 = vlaneseq
      %v2349 = vshrl.u32 %v2348, 7
      %v2350 = vsub.s32 %v1907, %v2349
      %v2351 = vrot.slane %v1888, %v2350
      %v2352 = vlaneseq
      %v2353 = vshrl.u32 %v2352, 7
      %v2354 = vsub.s32 %v1907, %v2353
      %v2355 = vrot.slane %v1889, %v2354
      %v2356 = vlaneseq
      %v2357 = vshrl.u32 %v2356, 7
      %v2358 = vsub.s32 %v1907, %v2357
      %v2359 = vrot.slane %v1890, %v2358
      %v2360 = vlaneseq
      %v2361 = vshrl.u32 %v2360, 7
      %v2362 = vsub.s32 %v1907, %v2361
      %v2363 = vrot.slane %v1891, %v2362
      %v2364 = vlaneseq
      %v2365 = vshrl.u32 %v2364, 7
      %v2366 = vsub.s32 %v1907, %v2365
      %v2367 = vrot.slane %v1892, %v2366
      %v2368 = vlaneseq
      %v2369 = vshrl.u32 %v2368, 7
      %v2370 = vsub.s32 %v1907, %v2369
      %v2371 = vrot.slane %v1893, %v2370
      %v2372 = vlaneseq
      %v2373 = vshrl.u32 %v2372, 7
      %v2374 = vsub.s32 %v1907, %v2373
      %v2375 = vrot.slane %v1894, %v2374
      %v2376 = vlaneseq
      %v2377 = vshrl.u32 %v2376, 7
      %v2378 = vsub.s32 %v1907, %v2377
      %v2379 = vrot.slane %v1895, %v2378
      %v2380 = vlaneseq
      %v2381 = vshrl.u32 %v2380, 7
      %v2382 = vsub.s32 %v1907, %v2381
      %v2383 = vrot.slane %v1896, %v2382
      %v2384 = vlaneseq
      %v2385 = vshrl.u32 %v2384, 7
      %v2386 = vsub.s32 %v1907, %v2385
      %v2387 = vrot.slane %v1897, %v2386
      %v2388 = vlaneseq
      %v2389 = vshrl.u32 %v2388, 7
      %v2390 = vsub.s32 %v1907, %v2389
      %v2391 = vrot.slane %v1898, %v2390
      %v2392 = vlaneseq
      %v2393 = vshrl.u32 %v2392, 7
      %v2394 = vsub.s32 %v1907, %v2393
      %v2395 = vrot.slane %v1899, %v2394
      %v2396 = vlaneseq
      %v2397 = vshrl.u32 %v2396, 7
      %v2398 = vsub.s32 %v1907, %v2397
      %v2399 = vrot.slane %v1900, %v2398
      %v2400 = vlaneseq
      %v2401 = vshrl.u32 %v2400, 7
      %v2402 = vsub.s32 %v1907, %v2401
      %v2403 = vrot.slane %v1901, %v2402
      %v2404 = vlaneseq
      %v2405 = vshrl.u32 %v2404, 7
      %v2406 = vsub.s32 %v1907, %v2405
      %v2407 = vrot.slane %v1902, %v2406
      %v2408 = vlaneseq
      %v2409 = vshrl.u32 %v2408, 7
      %v2410 = vsub.s32 %v1907, %v2409
      %v2411 = vrot.slane %v1903, %v2410
      %v2412 = vlaneseq
      %v2413 = vshrl.u32 %v2412, 7
      %v2414 = vsub.s32 %v1907, %v2413
      %v2415 = vrot.slane %v1904, %v2414
      %v2416 = vlaneseq
      %v2417 = vshrl.u32 %v2416, 7
      %v2418 = vsub.s32 %v1907, %v2417
      %v2419 = vrot.slane %v1905, %v2418
      %vm2420 = vcmask 1041409
      %v2421 = vsel %vm2420, %v1915, %v1911
      %vm2422 = vcmask 1042434
      %v2423 = vsel %vm2422, %v1919, %v2421
      %vm2424 = vcmask 1043459
      %v2425 = vsel %vm2424, %v1923, %v2423
      %vm2426 = vcmask 1044484
      %v2427 = vsel %vm2426, %v1927, %v2425
      %vm2428 = vcmask 1045509
      %v2429 = vsel %vm2428, %v1931, %v2427
      %vm2430 = vcmask 1046534
      %v2431 = vsel %vm2430, %v1935, %v2429
      %vm2432 = vcmask 1047559
      %v2433 = vsel %vm2432, %v1939, %v2431
      %v2434 = vsel %vm2420, %v1947, %v1943
      %v2435 = vsel %vm2422, %v1951, %v2434
      %v2436 = vsel %vm2424, %v1955, %v2435
      %v2437 = vsel %vm2426, %v1959, %v2436
      %v2438 = vsel %vm2428, %v1963, %v2437
      %v2439 = vsel %vm2430, %v1967, %v2438
      %v2440 = vsel %vm2432, %v1971, %v2439
      %v2441 = vsel %vm2420, %v1979, %v1975
      %v2442 = vsel %vm2422, %v1983, %v2441
      %v2443 = vsel %vm2424, %v1987, %v2442
      %v2444 = vsel %vm2426, %v1991, %v2443
      %v2445 = vsel %vm2428, %v1995, %v2444
      %v2446 = vsel %vm2430, %v1999, %v2445
      %v2447 = vsel %vm2432, %v2003, %v2446
      %v2448 = vsel %vm2420, %v2011, %v2007
      %v2449 = vsel %vm2422, %v2015, %v2448
      %v2450 = vsel %vm2424, %v2019, %v2449
      %v2451 = vsel %vm2426, %v2023, %v2450
      %v2452 = vsel %vm2428, %v2027, %v2451
      %v2453 = vsel %vm2430, %v2031, %v2452
      %v2454 = vsel %vm2432, %v2035, %v2453
      %v2455 = vsel %vm2420, %v2043, %v2039
      %v2456 = vsel %vm2422, %v2047, %v2455
      %v2457 = vsel %vm2424, %v2051, %v2456
      %v2458 = vsel %vm2426, %v2055, %v2457
      %v2459 = vsel %vm2428, %v2059, %v2458
      %v2460 = vsel %vm2430, %v2063, %v2459
      %v2461 = vsel %vm2432, %v2067, %v2460
      %v2462 = vsel %vm2420, %v2075, %v2071
      %v2463 = vsel %vm2422, %v2079, %v2462
      %v2464 = vsel %vm2424, %v2083, %v2463
      %v2465 = vsel %vm2426, %v2087, %v2464
      %v2466 = vsel %vm2428, %v2091, %v2465
      %v2467 = vsel %vm2430, %v2095, %v2466
      %v2468 = vsel %vm2432, %v2099, %v2467
      %v2469 = vsel %vm2420, %v2107, %v2103
      %v2470 = vsel %vm2422, %v2111, %v2469
      %v2471 = vsel %vm2424, %v2115, %v2470
      %v2472 = vsel %vm2426, %v2119, %v2471
      %v2473 = vsel %vm2428, %v2123, %v2472
      %v2474 = vsel %vm2430, %v2127, %v2473
      %v2475 = vsel %vm2432, %v2131, %v2474
      %v2476 = vsel %vm2420, %v2139, %v2135
      %v2477 = vsel %vm2422, %v2143, %v2476
      %v2478 = vsel %vm2424, %v2147, %v2477
      %v2479 = vsel %vm2426, %v2151, %v2478
      %v2480 = vsel %vm2428, %v2155, %v2479
      %v2481 = vsel %vm2430, %v2159, %v2480
      %v2482 = vsel %vm2432, %v2163, %v2481
      %v2483 = vsel %vm2420, %v2171, %v2167
      %v2484 = vsel %vm2422, %v2175, %v2483
      %v2485 = vsel %vm2424, %v2179, %v2484
      %v2486 = vsel %vm2426, %v2183, %v2485
      %v2487 = vsel %vm2428, %v2187, %v2486
      %v2488 = vsel %vm2430, %v2191, %v2487
      %v2489 = vsel %vm2432, %v2195, %v2488
      %v2490 = vsel %vm2420, %v2203, %v2199
      %v2491 = vsel %vm2422, %v2207, %v2490
      %v2492 = vsel %vm2424, %v2211, %v2491
      %v2493 = vsel %vm2426, %v2215, %v2492
      %v2494 = vsel %vm2428, %v2219, %v2493
      %v2495 = vsel %vm2430, %v2223, %v2494
      %v2496 = vsel %vm2432, %v2227, %v2495
      %v2497 = vsel %vm2420, %v2235, %v2231
      %v2498 = vsel %vm2422, %v2239, %v2497
      %v2499 = vsel %vm2424, %v2243, %v2498
      %v2500 = vsel %vm2426, %v2247, %v2499
      %v2501 = vsel %vm2428, %v2251, %v2500
      %v2502 = vsel %vm2430, %v2255, %v2501
      %v2503 = vsel %vm2432, %v2259, %v2502
      %v2504 = vsel %vm2420, %v2267, %v2263
      %v2505 = vsel %vm2422, %v2271, %v2504
      %v2506 = vsel %vm2424, %v2275, %v2505
      %v2507 = vsel %vm2426, %v2279, %v2506
      %v2508 = vsel %vm2428, %v2283, %v2507
      %v2509 = vsel %vm2430, %v2287, %v2508
      %v2510 = vsel %vm2432, %v2291, %v2509
      %v2511 = vsel %vm2420, %v2299, %v2295
      %v2512 = vsel %vm2422, %v2303, %v2511
      %v2513 = vsel %vm2424, %v2307, %v2512
      %v2514 = vsel %vm2426, %v2311, %v2513
      %v2515 = vsel %vm2428, %v2315, %v2514
      %v2516 = vsel %vm2430, %v2319, %v2515
      %v2517 = vsel %vm2432, %v2323, %v2516
      %v2518 = vsel %vm2420, %v2331, %v2327
      %v2519 = vsel %vm2422, %v2335, %v2518
      %v2520 = vsel %vm2424, %v2339, %v2519
      %v2521 = vsel %vm2426, %v2343, %v2520
      %v2522 = vsel %vm2428, %v2347, %v2521
      %v2523 = vsel %vm2430, %v2351, %v2522
      %v2524 = vsel %vm2432, %v2355, %v2523
      %v2525 = vsel %vm2420, %v2363, %v2359
      %v2526 = vsel %vm2422, %v2367, %v2525
      %v2527 = vsel %vm2424, %v2371, %v2526
      %v2528 = vsel %vm2426, %v2375, %v2527
      %v2529 = vsel %vm2428, %v2379, %v2528
      %v2530 = vsel %vm2430, %v2383, %v2529
      %v2531 = vsel %vm2432, %v2387, %v2530
      %v2532 = vsel %vm2420, %v2395, %v2391
      %v2533 = vsel %vm2422, %v2399, %v2532
      %v2534 = vsel %vm2424, %v2403, %v2533
      %v2535 = vsel %vm2426, %v2407, %v2534
      %v2536 = vsel %vm2428, %v2411, %v2535
      %v2537 = vsel %vm2430, %v2415, %v2536
      %v2538 = vsel %vm2432, %v2419, %v2537
      %v2539 = vpack.c.b16 %v2440, %v2433
      %v2540 = vpack.c.b16 %v2454, %v2447
      %v2541 = vpack.c.b16 %v2468, %v2461
      %v2542 = vpack.c.b16 %v2482, %v2475
      %v2543 = vpack.c.b16 %v2496, %v2489
      %v2544 = vpack.c.b16 %v2510, %v2503
      %v2545 = vpack.c.b16 %v2524, %v2517
      %v2546 = vpack.c.b16 %v2538, %v2531
      %vm2547 = vcmask 31744
      %v2549 = vsel %vm2547, %v2539, 0
      %v2552 = vsel %vm2547, %v2540, 0
      %v2555 = vsel %vm2547, %v2541, 0
      %v2558 = vsel %vm2547, %v2542, 0
      %v2561 = vsel %vm2547, %v2543, 0
      %v2564 = vsel %vm2547, %v2544, 0
      %v2567 = vsel %vm2547, %v2545, 0
      %v2570 = vsel %vm2547, %v2546, 0
      %vm2572 = vcmask 1041408
      %v2574 = vsel %vm2572, %v1642, 0
      %2576 = vmatprep.subr.bf16.mxu0 0
      %2577 = vmatpush1.bf16.msra.mxu0 %v2574
      %2578 = vmatprep.subr.bf16.mxu0 0
      %2579 = vmatpush1.bf16.msra.mxu0 0
      %2580 = vmatprep.subr.bf16.mxu0 0
      %2581 = vmatpush1.bf16.msra.mxu0 0
      %2582 = vmatprep.subr.bf16.mxu0 0
      %2583 = vmatpush1.bf16.msra.mxu0 0
      %2584 = vmatprep.subr.bf16.mxu0 0
      %2585 = vmatpush1.bf16.msra.mxu0 0
      %2586 = vmatprep.subr.bf16.mxu0 0
      %2587 = vmatpush1.bf16.msra.mxu0 0
      %2588 = vmatprep.subr.bf16.mxu0 0
      %2589 = vmatpush1.bf16.msra.mxu0 0
      %2590 = vmatprep.subr.bf16.mxu0 0
      %2591 = vmatpush1.bf16.msra.mxu0 0
      %2592 = vmatprep.subr.bf16.mxu0 0
      %2593 = vmatpush1.bf16.msra.mxu0 0
      %2594 = vmatprep.subr.bf16.mxu0 0
      %2595 = vmatpush1.bf16.msra.mxu0 0
      %2596 = vmatprep.subr.bf16.mxu0 0
      %2597 = vmatpush1.bf16.msra.mxu0 0
      %2598 = vmatprep.subr.bf16.mxu0 0
      %2599 = vmatpush1.bf16.msra.mxu0 0
      %2600 = vmatprep.subr.bf16.mxu0 0
      %2601 = vmatpush1.bf16.msra.mxu0 0
      %2602 = vmatprep.subr.bf16.mxu0 0
      %2603 = vmatpush1.bf16.msra.mxu0 0
      %2604 = vmatprep.subr.bf16.mxu0 0
      %2605 = vmatpush1.bf16.msra.mxu0 0
      %2606 = vmatprep.subr.bf16.mxu0 0
      %2607 = vmatpush1.bf16.msra.mxu0 0
      %2608 = vmatprep.mubr.bf16.mxu0 0
      %2609 = vmatmul.mubr.bf16.gmra.mrb[0].mxu0 %v2549
      %v2610 = vpop.f32.mrb[0].mxu0
      %v2611 = vadd.f32 %v1648, %v2610
      %v2612 = vpop.f32.mrb[0].mxu0
      %v2613 = vpop.f32.mrb[0].mxu0
      %v2614 = vadd.f32 %v1648, %v2613
      %v2615 = vpop.f32.mrb[0].mxu0
      %2616 = vmatprep.mubr.bf16.mxu0 0
      %2617 = vmatmul.mubr.bf16.gmra.mrb[0].mxu0 %v2552
      %v2618 = vpop.f32.mrb[0].mxu0
      %v2619 = vadd.f32 %v1648, %v2618
      %v2620 = vpop.f32.mrb[0].mxu0
      %v2621 = vpop.f32.mrb[0].mxu0
      %v2622 = vadd.f32 %v1648, %v2621
      %v2623 = vpop.f32.mrb[0].mxu0
      %2624 = vmatprep.mubr.bf16.mxu0 0
      %2625 = vmatmul.mubr.bf16.gmra.mrb[0].mxu0 %v2555
      %v2626 = vpop.f32.mrb[0].mxu0
      %v2627 = vadd.f32 %v1648, %v2626
      %v2628 = vpop.f32.mrb[0].mxu0
      %v2629 = vpop.f32.mrb[0].mxu0
      %v2630 = vadd.f32 %v1648, %v2629
      %v2631 = vpop.f32.mrb[0].mxu0
      %2632 = vmatprep.mubr.bf16.mxu0 0
      %2633 = vmatmul.mubr.bf16.gmra.mrb[0].mxu0 %v2558
      %v2634 = vpop.f32.mrb[0].mxu0
      %v2635 = vadd.f32 %v1648, %v2634
      %v2636 = vpop.f32.mrb[0].mxu0
      %v2637 = vpop.f32.mrb[0].mxu0
      %v2638 = vadd.f32 %v1648, %v2637
      %v2639 = vpop.f32.mrb[0].mxu0
      %2640 = vmatprep.mubr.bf16.mxu0 0
      %2641 = vmatmul.mubr.bf16.gmra.mrb[0].mxu0 %v2561
      %v2642 = vpop.f32.mrb[0].mxu0
      %v2643 = vadd.f32 %v1648, %v2642
      %v2644 = vpop.f32.mrb[0].mxu0
      %v2645 = vpop.f32.mrb[0].mxu0
      %v2646 = vadd.f32 %v1648, %v2645
      %v2647 = vpop.f32.mrb[0].mxu0
      %2648 = vmatprep.mubr.bf16.mxu0 0
      %2649 = vmatmul.mubr.bf16.gmra.mrb[0].mxu0 %v2564
      %v2650 = vpop.f32.mrb[0].mxu0
      %v2651 = vadd.f32 %v1648, %v2650
      %v2652 = vpop.f32.mrb[0].mxu0
      %v2653 = vpop.f32.mrb[0].mxu0
      %v2654 = vadd.f32 %v1648, %v2653
      %v2655 = vpop.f32.mrb[0].mxu0
      %2656 = vmatprep.mubr.bf16.mxu0 0
      %2657 = vmatmul.mubr.bf16.gmra.mrb[0].mxu0 %v2567
      %v2658 = vpop.f32.mrb[0].mxu0
      %v2659 = vadd.f32 %v1648, %v2658
      %v2660 = vpop.f32.mrb[0].mxu0
      %v2661 = vpop.f32.mrb[0].mxu0
      %v2662 = vadd.f32 %v1648, %v2661
      %v2663 = vpop.f32.mrb[0].mxu0
      %2664 = vmatprep.mubr.bf16.mxu0 0
      %2665 = vmatmul.mubr.bf16.gmra.mrb[0].mxu0 %v2570
      %v2666 = vpop.f32.mrb[0].mxu0
      %v2667 = vadd.f32 %v1648, %v2666
      %v2668 = vpop.f32.mrb[0].mxu0
      %v2669 = vpop.f32.mrb[0].mxu0
      %v2670 = vadd.f32 %v1648, %v2669
      %v2671 = vpop.f32.mrb[0].mxu0
      %2672 = vdwg.mxu0
      %v2673 = vmul.f32 %v2611, %v2611
      %v2674 = vmul.f32 %v2614, %v2614
      %v2675 = vmul.f32 %v2619, %v2619
      %v2676 = vmul.f32 %v2622, %v2622
      %v2677 = vmul.f32 %v2627, %v2627
      %v2678 = vmul.f32 %v2630, %v2630
      %v2679 = vmul.f32 %v2635, %v2635
      %v2680 = vmul.f32 %v2638, %v2638
      %v2681 = vmul.f32 %v2643, %v2643
      %v2682 = vmul.f32 %v2646, %v2646
      %v2683 = vmul.f32 %v2651, %v2651
      %v2684 = vmul.f32 %v2654, %v2654
      %v2685 = vmul.f32 %v2659, %v2659
      %v2686 = vmul.f32 %v2662, %v2662
      %v2687 = vmul.f32 %v2667, %v2667
      %v2688 = vmul.f32 %v2670, %v2670
      %vm2689 = vcmp.lt.s32.totalorder %v1907, 32
      %vm2690 = vcmask 523264
      %v2691 = vsel %vm2690, %v2673, 0.0
      %2692 = vadd.xlane.f32.xlu0 %v2691
      %v2693 = vpop.xlane.xlu0 %2692
      %v2694 = vsel %vm2690, %v2674, 0.0
      %2695 = vadd.xlane.f32.xlu0 %v2694
      %v2696 = vpop.xlane.xlu0 %2695
      %v2697 = vsel %vm2690, %v2675, 0.0
      %2698 = vadd.xlane.f32.xlu0 %v2697
      %v2699 = vpop.xlane.xlu0 %2698
      %v2700 = vsel %vm2690, %v2676, 0.0
      %2701 = vadd.xlane.f32.xlu0 %v2700
      %v2702 = vpop.xlane.xlu0 %2701
      %v2703 = vsel %vm2690, %v2677, 0.0
      %2704 = vadd.xlane.f32.xlu0 %v2703
      %v2705 = vpop.xlane.xlu0 %2704
      %v2706 = vsel %vm2690, %v2678, 0.0
      %2707 = vadd.xlane.f32.xlu0 %v2706
      %v2708 = vpop.xlane.xlu0 %2707
      %v2709 = vsel %vm2690, %v2679, 0.0
      %2710 = vadd.xlane.f32.xlu0 %v2709
      %v2711 = vpop.xlane.xlu0 %2710
      %v2712 = vsel %vm2690, %v2680, 0.0
      %2713 = vadd.xlane.f32.xlu0 %v2712
      %v2714 = vpop.xlane.xlu0 %2713
      %v2715 = vsel %vm2690, %v2681, 0.0
      %2716 = vadd.xlane.f32.xlu0 %v2715
      %v2717 = vpop.xlane.xlu0 %2716
      %v2718 = vsel %vm2690, %v2682, 0.0
      %2719 = vadd.xlane.f32.xlu0 %v2718
      %v2720 = vpop.xlane.xlu0 %2719
      %v2721 = vsel %vm2690, %v2683, 0.0
      %2722 = vadd.xlane.f32.xlu0 %v2721
      %v2723 = vpop.xlane.xlu0 %2722
      %v2724 = vsel %vm2690, %v2684, 0.0
      %2725 = vadd.xlane.f32.xlu0 %v2724
      %v2726 = vpop.xlane.xlu0 %2725
      %v2727 = vsel %vm2690, %v2685, 0.0
      %2728 = vadd.xlane.f32.xlu0 %v2727
      %v2729 = vpop.xlane.xlu0 %2728
      %v2730 = vsel %vm2690, %v2686, 0.0
      %2731 = vadd.xlane.f32.xlu0 %v2730
      %v2732 = vpop.xlane.xlu0 %2731
      %v2733 = vsel %vm2690, %v2687, 0.0
      %2734 = vadd.xlane.f32.xlu0 %v2733
      %v2735 = vpop.xlane.xlu0 %2734
      %v2736 = vsel %vm2690, %v2688, 0.0
      %2737 = vadd.xlane.f32.xlu0 %v2736
      %v2738 = vpop.xlane.xlu0 %2737
      %v2739 = vsel %vm2689, %v2673, 0.0
      %v2740 = vsel %vm2689, %v2674, 0.0
      %v2741 = vsel %vm2689, %v2675, 0.0
      %v2742 = vsel %vm2689, %v2676, 0.0
      %v2743 = vsel %vm2689, %v2677, 0.0
      %v2744 = vsel %vm2689, %v2678, 0.0
      %v2745 = vsel %vm2689, %v2679, 0.0
      %v2746 = vsel %vm2689, %v2680, 0.0
      %v2747 = vsel %vm2689, %v2681, 0.0
      %v2748 = vsel %vm2689, %v2682, 0.0
      %v2749 = vsel %vm2689, %v2683, 0.0
      %v2750 = vsel %vm2689, %v2684, 0.0
      %v2751 = vsel %vm2689, %v2685, 0.0
      %v2752 = vsel %vm2689, %v2686, 0.0
      %v2753 = vsel %vm2689, %v2687, 0.0
      %v2754 = vsel %vm2689, %v2688, 0.0
      %v2755 = vsel %vm2690, %v2739, 0.0
      %2756 = vadd.xlane.f32.xlu0 %v2755
      %v2757 = vpop.xlane.xlu0 %2756
      %v2758 = vsel %vm2690, %v2740, 0.0
      %2759 = vadd.xlane.f32.xlu0 %v2758
      %v2760 = vpop.xlane.xlu0 %2759
      %v2761 = vsel %vm2690, %v2741, 0.0
      %2762 = vadd.xlane.f32.xlu0 %v2761
      %v2763 = vpop.xlane.xlu0 %2762
      %v2764 = vsel %vm2690, %v2742, 0.0
      %2765 = vadd.xlane.f32.xlu0 %v2764
      %v2766 = vpop.xlane.xlu0 %2765
      %v2767 = vsel %vm2690, %v2743, 0.0
      %2768 = vadd.xlane.f32.xlu0 %v2767
      %v2769 = vpop.xlane.xlu0 %2768
      %v2770 = vsel %vm2690, %v2744, 0.0
      %2771 = vadd.xlane.f32.xlu0 %v2770
      %v2772 = vpop.xlane.xlu0 %2771
      %v2773 = vsel %vm2690, %v2745, 0.0
      %2774 = vadd.xlane.f32.xlu0 %v2773
      %v2775 = vpop.xlane.xlu0 %2774
      %v2776 = vsel %vm2690, %v2746, 0.0
      %2777 = vadd.xlane.f32.xlu0 %v2776
      %v2778 = vpop.xlane.xlu0 %2777
      %v2779 = vsel %vm2690, %v2747, 0.0
      %2780 = vadd.xlane.f32.xlu0 %v2779
      %v2781 = vpop.xlane.xlu0 %2780
      %v2782 = vsel %vm2690, %v2748, 0.0
      %2783 = vadd.xlane.f32.xlu0 %v2782
      %v2784 = vpop.xlane.xlu0 %2783
      %v2785 = vsel %vm2690, %v2749, 0.0
      %2786 = vadd.xlane.f32.xlu0 %v2785
      %v2787 = vpop.xlane.xlu0 %2786
      %v2788 = vsel %vm2690, %v2750, 0.0
      %2789 = vadd.xlane.f32.xlu0 %v2788
      %v2790 = vpop.xlane.xlu0 %2789
      %v2791 = vsel %vm2690, %v2751, 0.0
      %2792 = vadd.xlane.f32.xlu0 %v2791
      %v2793 = vpop.xlane.xlu0 %2792
      %v2794 = vsel %vm2690, %v2752, 0.0
      %2795 = vadd.xlane.f32.xlu0 %v2794
      %v2796 = vpop.xlane.xlu0 %2795
      %v2797 = vsel %vm2690, %v2753, 0.0
      %2798 = vadd.xlane.f32.xlu0 %v2797
      %v2799 = vpop.xlane.xlu0 %2798
      %v2800 = vsel %vm2690, %v2754, 0.0
      %2801 = vadd.xlane.f32.xlu0 %v2800
      %v2802 = vpop.xlane.xlu0 %2801
      %v2803 = vsub.f32 %v2693, %v2757
      %v2804 = vsub.f32 %v2696, %v2760
      %v2805 = vsub.f32 %v2699, %v2763
      %v2806 = vsub.f32 %v2702, %v2766
      %v2807 = vsub.f32 %v2705, %v2769
      %v2808 = vsub.f32 %v2708, %v2772
      %v2809 = vsub.f32 %v2711, %v2775
      %v2810 = vsub.f32 %v2714, %v2778
      %v2811 = vsub.f32 %v2717, %v2781
      %v2812 = vsub.f32 %v2720, %v2784
      %v2813 = vsub.f32 %v2723, %v2787
      %v2814 = vsub.f32 %v2726, %v2790
      %v2815 = vsub.f32 %v2729, %v2793
      %v2816 = vsub.f32 %v2732, %v2796
      %v2817 = vsub.f32 %v2735, %v2799
      %v2818 = vsub.f32 %v2738, %v2802
      %v2819 = vmax.f32 %v2757, 1e-24
      %v2820 = vmax.f32 %v2760, 1e-24
      %v2821 = vmax.f32 %v2763, 1e-24
      %v2822 = vmax.f32 %v2766, 1e-24
      %v2823 = vmax.f32 %v2769, 1e-24
      %v2824 = vmax.f32 %v2772, 1e-24
      %v2825 = vmax.f32 %v2775, 1e-24
      %v2826 = vmax.f32 %v2778, 1e-24
      %v2827 = vmax.f32 %v2781, 1e-24
      %v2828 = vmax.f32 %v2784, 1e-24
      %v2829 = vmax.f32 %v2787, 1e-24
      %v2830 = vmax.f32 %v2790, 1e-24
      %v2831 = vmax.f32 %v2793, 1e-24
      %v2832 = vmax.f32 %v2796, 1e-24
      %v2833 = vmax.f32 %v2799, 1e-24
      %v2834 = vmax.f32 %v2802, 1e-24
      %v2835 = vrsqrt.pop %v2819
      %v2836 = vrsqrt.pop %v2820
      %v2837 = vrsqrt.pop %v2821
      %v2838 = vrsqrt.pop %v2822
      %v2839 = vrsqrt.pop %v2823
      %v2840 = vrsqrt.pop %v2824
      %v2841 = vrsqrt.pop %v2825
      %v2842 = vrsqrt.pop %v2826
      %v2843 = vrsqrt.pop %v2827
      %v2844 = vrsqrt.pop %v2828
      %v2845 = vrsqrt.pop %v2829
      %v2846 = vrsqrt.pop %v2830
      %v2847 = vrsqrt.pop %v2831
      %v2848 = vrsqrt.pop %v2832
      %v2849 = vrsqrt.pop %v2833
      %v2850 = vrsqrt.pop %v2834
      %v2851 = vmax.f32 %v2803, 1e-24
      %v2852 = vmax.f32 %v2804, 1e-24
      %v2853 = vmax.f32 %v2805, 1e-24
      %v2854 = vmax.f32 %v2806, 1e-24
      %v2855 = vmax.f32 %v2807, 1e-24
      %v2856 = vmax.f32 %v2808, 1e-24
      %v2857 = vmax.f32 %v2809, 1e-24
      %v2858 = vmax.f32 %v2810, 1e-24
      %v2859 = vmax.f32 %v2811, 1e-24
      %v2860 = vmax.f32 %v2812, 1e-24
      %v2861 = vmax.f32 %v2813, 1e-24
      %v2862 = vmax.f32 %v2814, 1e-24
      %v2863 = vmax.f32 %v2815, 1e-24
      %v2864 = vmax.f32 %v2816, 1e-24
      %v2865 = vmax.f32 %v2817, 1e-24
      %v2866 = vmax.f32 %v2818, 1e-24
      %v2867 = vrsqrt.pop %v2851
      %v2868 = vrsqrt.pop %v2852
      %v2869 = vrsqrt.pop %v2853
      %v2870 = vrsqrt.pop %v2854
      %v2871 = vrsqrt.pop %v2855
      %v2872 = vrsqrt.pop %v2856
      %v2873 = vrsqrt.pop %v2857
      %v2874 = vrsqrt.pop %v2858
      %v2875 = vrsqrt.pop %v2859
      %v2876 = vrsqrt.pop %v2860
      %v2877 = vrsqrt.pop %v2861
      %v2878 = vrsqrt.pop %v2862
      %v2879 = vrsqrt.pop %v2863
      %v2880 = vrsqrt.pop %v2864
      %v2881 = vrsqrt.pop %v2865
      %v2882 = vrsqrt.pop %v2866
      %v2883 = vsel %vm2689, %v2835, %v2867
      %v2884 = vsel %vm2689, %v2836, %v2868
      %v2885 = vsel %vm2689, %v2837, %v2869
      %v2886 = vsel %vm2689, %v2838, %v2870
      %v2887 = vsel %vm2689, %v2839, %v2871
      %v2888 = vsel %vm2689, %v2840, %v2872
      %v2889 = vsel %vm2689, %v2841, %v2873
      %v2890 = vsel %vm2689, %v2842, %v2874
      %v2891 = vsel %vm2689, %v2843, %v2875
      %v2892 = vsel %vm2689, %v2844, %v2876
      %v2893 = vsel %vm2689, %v2845, %v2877
      %v2894 = vsel %vm2689, %v2846, %v2878
      %v2895 = vsel %vm2689, %v2847, %v2879
      %v2896 = vsel %vm2689, %v2848, %v2880
      %v2897 = vsel %vm2689, %v2849, %v2881
      %v2898 = vsel %vm2689, %v2850, %v2882
      %v2899 = vmul.f32 %v2611, %v2883
      %v2900 = vmul.f32 %v2614, %v2884
      %v2901 = vmul.f32 %v2619, %v2885
      %v2902 = vmul.f32 %v2622, %v2886
      %v2903 = vmul.f32 %v2627, %v2887
      %v2904 = vmul.f32 %v2630, %v2888
      %v2905 = vmul.f32 %v2635, %v2889
      %v2906 = vmul.f32 %v2638, %v2890
      %v2907 = vmul.f32 %v2643, %v2891
      %v2908 = vmul.f32 %v2646, %v2892
      %v2909 = vmul.f32 %v2651, %v2893
      %v2910 = vmul.f32 %v2654, %v2894
      %v2911 = vmul.f32 %v2659, %v2895
      %v2912 = vmul.f32 %v2662, %v2896
      %v2913 = vmul.f32 %v2667, %v2897
      %v2914 = vmul.f32 %v2670, %v2898
      %v2915 = vpack.c.bf16 %v2900, %v2899
      %v2916 = vpack.c.bf16 %v2902, %v2901
      %v2917 = vpack.c.bf16 %v2904, %v2903
      %v2918 = vpack.c.bf16 %v2906, %v2905
      %v2919 = vpack.c.bf16 %v2908, %v2907
      %v2920 = vpack.c.bf16 %v2910, %v2909
      %v2921 = vpack.c.bf16 %v2912, %v2911
      %v2922 = vpack.c.bf16 %v2914, %v2913
      %v2923 = vld [vmem:[%s3] sm:$0xf]
      %v2924 = vld [vmem:[%s3 + $0x4] sm:$0xf]
      %v2925 = vld [vmem:[%s3 + $0x8] sm:$0xf]
      %v2926 = vld [vmem:[%s3 + $0xc] sm:$0xf]
      %v2927 = vld [vmem:[%s3 + $0x10] sm:$0xf]
      %v2928 = vld [vmem:[%s3 + $0x14] sm:$0xf]
      %v2929 = vld [vmem:[%s3 + $0x18] sm:$0xf]
      %v2930 = vld [vmem:[%s3 + $0x1c] sm:$0xf]
      %v2931 = vld [vmem:[%s4] sm:$0x1]
      %v2933 = vlaneseq
      %v2934 = vshrl.u32 %v2933, 7
      %v2935 = vsub.s32 0, %v2934
      %v2936 = vrot.slane %v2931, %v2935
      %v2946 = vunpack.c.l.b16 %v2923
      %v2947 = vunpack.c.l.b16 %v2924
      %v2948 = vunpack.c.l.b16 %v2925
      %v2949 = vunpack.c.l.b16 %v2926
      %v2950 = vunpack.c.l.b16 %v2927
      %v2951 = vunpack.c.l.b16 %v2928
      %v2952 = vunpack.c.l.b16 %v2929
      %v2953 = vunpack.c.l.b16 %v2930
      %v2954 = vpack.c.b16 %v2947, %v2946
      %v2955 = vpack.c.b16 %v2949, %v2948
      %v2956 = vpack.c.b16 %v2951, %v2950
      %v2957 = vpack.c.b16 %v2953, %v2952
      %v2963 = vsel %vm2690, %v2915, 0
      %v2966 = vsel %vm2690, %v2916, 0
      %v2969 = vsel %vm2690, %v2917, 0
      %v2972 = vsel %vm2690, %v2918, 0
      %v2975 = vsel %vm2690, %v2919, 0
      %v2978 = vsel %vm2690, %v2920, 0
      %v2981 = vsel %vm2690, %v2921, 0
      %v2984 = vsel %vm2690, %v2922, 0
      %2986 = vmatprep.subr.bf16.mxu0 0
      %2987 = vmatpush1.bf16.msra.mxu0 %v2954
      %2988 = vmatprep.subr.bf16.mxu0 0
      %2989 = vmatpush1.bf16.msra.mxu0 %v2955
      %2990 = vmatprep.subr.bf16.mxu0 0
      %2991 = vmatpush1.bf16.msra.mxu0 %v2956
      %2992 = vmatprep.subr.bf16.mxu0 0
      %2993 = vmatpush1.bf16.msra.mxu0 %v2957
      %2994 = vmatprep.subr.bf16.mxu0 0
      %2995 = vmatpush1.bf16.msra.mxu0 0
      %2996 = vmatprep.subr.bf16.mxu0 0
      %2997 = vmatpush1.bf16.msra.mxu0 0
      %2998 = vmatprep.subr.bf16.mxu0 0
      %2999 = vmatpush1.bf16.msra.mxu0 0
      %3000 = vmatprep.subr.bf16.mxu0 0
      %3001 = vmatpush1.bf16.msra.mxu0 0
      %3002 = vmatprep.subr.bf16.mxu0 0
      %3003 = vmatpush1.bf16.msra.mxu0 0
      %3004 = vmatprep.subr.bf16.mxu0 0
      %3005 = vmatpush1.bf16.msra.mxu0 0
      %3006 = vmatprep.subr.bf16.mxu0 0
      %3007 = vmatpush1.bf16.msra.mxu0 0
      %3008 = vmatprep.subr.bf16.mxu0 0
      %3009 = vmatpush1.bf16.msra.mxu0 0
      %3010 = vmatprep.subr.bf16.mxu0 0
      %3011 = vmatpush1.bf16.msra.mxu0 0
      %3012 = vmatprep.subr.bf16.mxu0 0
      %3013 = vmatpush1.bf16.msra.mxu0 0
      %3014 = vmatprep.subr.bf16.mxu0 0
      %3015 = vmatpush1.bf16.msra.mxu0 0
      %3016 = vmatprep.subr.bf16.mxu0 0
      %3017 = vmatpush1.bf16.msra.mxu0 0
      %3018 = vmatprep.mubr.bf16.mxu0 0
      %3019 = vmatmul.mubr.bf16.gmra.mrb[0].mxu0 %v2963
      %v3020 = vpop.f32.mrb[0].mxu0
      %v3021 = vadd.f32 %v2936, %v3020
      %v3022 = vpop.f32.mrb[0].mxu0
      %v3023 = vpop.f32.mrb[0].mxu0
      %v3024 = vadd.f32 %v2936, %v3023
      %v3025 = vpop.f32.mrb[0].mxu0
      %3026 = vmatprep.mubr.bf16.mxu0 0
      %3027 = vmatmul.mubr.bf16.gmra.mrb[0].mxu0 %v2966
      %v3028 = vpop.f32.mrb[0].mxu0
      %v3029 = vadd.f32 %v2936, %v3028
      %v3030 = vpop.f32.mrb[0].mxu0
      %v3031 = vpop.f32.mrb[0].mxu0
      %v3032 = vadd.f32 %v2936, %v3031
      %v3033 = vpop.f32.mrb[0].mxu0
      %3034 = vmatprep.mubr.bf16.mxu0 0
      %3035 = vmatmul.mubr.bf16.gmra.mrb[0].mxu0 %v2969
      %v3036 = vpop.f32.mrb[0].mxu0
      %v3037 = vadd.f32 %v2936, %v3036
      %v3038 = vpop.f32.mrb[0].mxu0
      %v3039 = vpop.f32.mrb[0].mxu0
      %v3040 = vadd.f32 %v2936, %v3039
      %v3041 = vpop.f32.mrb[0].mxu0
      %3042 = vmatprep.mubr.bf16.mxu0 0
      %3043 = vmatmul.mubr.bf16.gmra.mrb[0].mxu0 %v2972
      %v3044 = vpop.f32.mrb[0].mxu0
      %v3045 = vadd.f32 %v2936, %v3044
      %v3046 = vpop.f32.mrb[0].mxu0
      %v3047 = vpop.f32.mrb[0].mxu0
      %v3048 = vadd.f32 %v2936, %v3047
      %v3049 = vpop.f32.mrb[0].mxu0
      %3050 = vmatprep.mubr.bf16.mxu0 0
      %3051 = vmatmul.mubr.bf16.gmra.mrb[0].mxu0 %v2975
      %v3052 = vpop.f32.mrb[0].mxu0
      %v3053 = vadd.f32 %v2936, %v3052
      %v3054 = vpop.f32.mrb[0].mxu0
      %v3055 = vpop.f32.mrb[0].mxu0
      %v3056 = vadd.f32 %v2936, %v3055
      %v3057 = vpop.f32.mrb[0].mxu0
      %3058 = vmatprep.mubr.bf16.mxu0 0
      %3059 = vmatmul.mubr.bf16.gmra.mrb[0].mxu0 %v2978
      %v3060 = vpop.f32.mrb[0].mxu0
      %v3061 = vadd.f32 %v2936, %v3060
      %v3062 = vpop.f32.mrb[0].mxu0
      %v3063 = vpop.f32.mrb[0].mxu0
      %v3064 = vadd.f32 %v2936, %v3063
      %v3065 = vpop.f32.mrb[0].mxu0
      %3066 = vmatprep.mubr.bf16.mxu0 0
      %3067 = vmatmul.mubr.bf16.gmra.mrb[0].mxu0 %v2981
      %v3068 = vpop.f32.mrb[0].mxu0
      %v3069 = vadd.f32 %v2936, %v3068
      %v3070 = vpop.f32.mrb[0].mxu0
      %v3071 = vpop.f32.mrb[0].mxu0
      %v3072 = vadd.f32 %v2936, %v3071
      %v3073 = vpop.f32.mrb[0].mxu0
      %3074 = vmatprep.mubr.bf16.mxu0 0
      %3075 = vmatmul.mubr.bf16.gmra.mrb[0].mxu0 %v2984
      %v3076 = vpop.f32.mrb[0].mxu0
      %v3077 = vadd.f32 %v2936, %v3076
      %v3078 = vpop.f32.mrb[0].mxu0
      %v3079 = vpop.f32.mrb[0].mxu0
      %v3080 = vadd.f32 %v2936, %v3079
      %v3081 = vpop.f32.mrb[0].mxu0
      %3082 = vdwg.mxu0
      %v3083 = vmax.f32 %v3021, 0.0
      %v3084 = vmax.f32 %v3024, 0.0
      %v3085 = vmax.f32 %v3029, 0.0
      %v3086 = vmax.f32 %v3032, 0.0
      %v3087 = vmax.f32 %v3037, 0.0
      %v3088 = vmax.f32 %v3040, 0.0
      %v3089 = vmax.f32 %v3045, 0.0
      %v3090 = vmax.f32 %v3048, 0.0
      %v3091 = vmax.f32 %v3053, 0.0
      %v3092 = vmax.f32 %v3056, 0.0
      %v3093 = vmax.f32 %v3061, 0.0
      %v3094 = vmax.f32 %v3064, 0.0
      %v3095 = vmax.f32 %v3069, 0.0
      %v3096 = vmax.f32 %v3072, 0.0
      %v3097 = vmax.f32 %v3077, 0.0
      %v3098 = vmax.f32 %v3080, 0.0
      %v3099 = vmul.f32 %v3083, %v3083
      %v3100 = vmul.f32 %v3084, %v3084
      %v3101 = vmul.f32 %v3085, %v3085
      %v3102 = vmul.f32 %v3086, %v3086
      %v3103 = vmul.f32 %v3087, %v3087
      %v3104 = vmul.f32 %v3088, %v3088
      %v3105 = vmul.f32 %v3089, %v3089
      %v3106 = vmul.f32 %v3090, %v3090
      %v3107 = vmul.f32 %v3091, %v3091
      %v3108 = vmul.f32 %v3092, %v3092
      %v3109 = vmul.f32 %v3093, %v3093
      %v3110 = vmul.f32 %v3094, %v3094
      %v3111 = vmul.f32 %v3095, %v3095
      %v3112 = vmul.f32 %v3096, %v3096
      %v3113 = vmul.f32 %v3097, %v3097
      %v3114 = vmul.f32 %v3098, %v3098
      %3115 = vadd.xlane.f32.xlu0 %v3099
      %v3116 = vpop.xlane.xlu0 %3115
      %3117 = vadd.xlane.f32.xlu0 %v3100
      %v3118 = vpop.xlane.xlu0 %3117
      %3119 = vadd.xlane.f32.xlu0 %v3101
      %v3120 = vpop.xlane.xlu0 %3119
      %3121 = vadd.xlane.f32.xlu0 %v3102
      %v3122 = vpop.xlane.xlu0 %3121
      %3123 = vadd.xlane.f32.xlu0 %v3103
      %v3124 = vpop.xlane.xlu0 %3123
      %3125 = vadd.xlane.f32.xlu0 %v3104
      %v3126 = vpop.xlane.xlu0 %3125
      %3127 = vadd.xlane.f32.xlu0 %v3105
      %v3128 = vpop.xlane.xlu0 %3127
      %3129 = vadd.xlane.f32.xlu0 %v3106
      %v3130 = vpop.xlane.xlu0 %3129
      %3131 = vadd.xlane.f32.xlu0 %v3107
      %v3132 = vpop.xlane.xlu0 %3131
      %3133 = vadd.xlane.f32.xlu0 %v3108
      %v3134 = vpop.xlane.xlu0 %3133
      %3135 = vadd.xlane.f32.xlu0 %v3109
      %v3136 = vpop.xlane.xlu0 %3135
      %3137 = vadd.xlane.f32.xlu0 %v3110
      %v3138 = vpop.xlane.xlu0 %3137
      %3139 = vadd.xlane.f32.xlu0 %v3111
      %v3140 = vpop.xlane.xlu0 %3139
      %3141 = vadd.xlane.f32.xlu0 %v3112
      %v3142 = vpop.xlane.xlu0 %3141
      %3143 = vadd.xlane.f32.xlu0 %v3113
      %v3144 = vpop.xlane.xlu0 %3143
      %3145 = vadd.xlane.f32.xlu0 %v3114
      %v3146 = vpop.xlane.xlu0 %3145
      %v3147 = vmax.f32 %v3116, 1e-24
      %v3148 = vmax.f32 %v3118, 1e-24
      %v3149 = vmax.f32 %v3120, 1e-24
      %v3150 = vmax.f32 %v3122, 1e-24
      %v3151 = vmax.f32 %v3124, 1e-24
      %v3152 = vmax.f32 %v3126, 1e-24
      %v3153 = vmax.f32 %v3128, 1e-24
      %v3154 = vmax.f32 %v3130, 1e-24
      %v3155 = vmax.f32 %v3132, 1e-24
      %v3156 = vmax.f32 %v3134, 1e-24
      %v3157 = vmax.f32 %v3136, 1e-24
      %v3158 = vmax.f32 %v3138, 1e-24
      %v3159 = vmax.f32 %v3140, 1e-24
      %v3160 = vmax.f32 %v3142, 1e-24
      %v3161 = vmax.f32 %v3144, 1e-24
      %v3162 = vmax.f32 %v3146, 1e-24
      %v3163 = vrsqrt.pop %v3147
      %v3164 = vrsqrt.pop %v3148
      %v3165 = vrsqrt.pop %v3149
      %v3166 = vrsqrt.pop %v3150
      %v3167 = vrsqrt.pop %v3151
      %v3168 = vrsqrt.pop %v3152
      %v3169 = vrsqrt.pop %v3153
      %v3170 = vrsqrt.pop %v3154
      %v3171 = vrsqrt.pop %v3155
      %v3172 = vrsqrt.pop %v3156
      %v3173 = vrsqrt.pop %v3157
      %v3174 = vrsqrt.pop %v3158
      %v3175 = vrsqrt.pop %v3159
      %v3176 = vrsqrt.pop %v3160
      %v3177 = vrsqrt.pop %v3161
      %v3178 = vrsqrt.pop %v3162
      %v3179 = vmul.f32 %v3083, %v3163
      %v3180 = vmul.f32 %v3084, %v3164
      %v3181 = vmul.f32 %v3085, %v3165
      %v3182 = vmul.f32 %v3086, %v3166
      %v3183 = vmul.f32 %v3087, %v3167
      %v3184 = vmul.f32 %v3088, %v3168
      %v3185 = vmul.f32 %v3089, %v3169
      %v3186 = vmul.f32 %v3090, %v3170
      %v3187 = vmul.f32 %v3091, %v3171
      %v3188 = vmul.f32 %v3092, %v3172
      %v3189 = vmul.f32 %v3093, %v3173
      %v3190 = vmul.f32 %v3094, %v3174
      %v3191 = vmul.f32 %v3095, %v3175
      %v3192 = vmul.f32 %v3096, %v3176
      %v3193 = vmul.f32 %v3097, %v3177
      %v3194 = vmul.f32 %v3098, %v3178
      %v3195 = vpack.c.bf16 %v3180, %v3179
      %v3196 = vpack.c.bf16 %v3182, %v3181
      %v3197 = vpack.c.bf16 %v3184, %v3183
      %v3198 = vpack.c.bf16 %v3186, %v3185
      %v3199 = vpack.c.bf16 %v3188, %v3187
      %v3200 = vpack.c.bf16 %v3190, %v3189
      %v3201 = vpack.c.bf16 %v3192, %v3191
      %v3202 = vpack.c.bf16 %v3194, %v3193
      %v3211 = vunpack.c.l.b16 %v3195
      %v3212 = vunpack.c.h.b16 %v3195
      %v3213 = vunpack.c.l.b16 %v3196
      %v3214 = vunpack.c.h.b16 %v3196
      %v3215 = vunpack.c.l.b16 %v3197
      %v3216 = vunpack.c.h.b16 %v3197
      %v3217 = vunpack.c.l.b16 %v3198
      %v3218 = vunpack.c.h.b16 %v3198
      %v3219 = vunpack.c.l.b16 %v3199
      %v3220 = vunpack.c.h.b16 %v3199
      %v3221 = vunpack.c.l.b16 %v3200
      %v3222 = vunpack.c.h.b16 %v3200
      %v3223 = vunpack.c.l.b16 %v3201
      %v3224 = vunpack.c.h.b16 %v3201
      %v3225 = vunpack.c.l.b16 %v3202
      %v3226 = vunpack.c.h.b16 %v3202
      %v3227 = vpack.c.b16 %v3211, %v3211
      %v3228 = vpack.c.b16 %v3212, %v3212
      %v3229 = vpack.c.b16 %v3213, %v3213
      %v3230 = vpack.c.b16 %v3214, %v3214
      %v3231 = vpack.c.b16 %v3215, %v3215
      %v3232 = vpack.c.b16 %v3216, %v3216
      %v3233 = vpack.c.b16 %v3217, %v3217
      %v3234 = vpack.c.b16 %v3218, %v3218
      %v3235 = vpack.c.b16 %v3219, %v3219
      %v3236 = vpack.c.b16 %v3220, %v3220
      %v3237 = vpack.c.b16 %v3221, %v3221
      %v3238 = vpack.c.b16 %v3222, %v3222
      %v3239 = vpack.c.b16 %v3223, %v3223
      %v3240 = vpack.c.b16 %v3224, %v3224
      %v3241 = vpack.c.b16 %v3225, %v3225
      %v3242 = vpack.c.b16 %v3226, %v3226
      %3259 = vst [vmem:[%s229] sm:$0xf] %v3227
      %3260 = vst [vmem:[%s229 + $0x4] sm:$0xf] %v3228
      %3261 = vst [vmem:[%s229 + $0x8] sm:$0xf] %v3229
      %3262 = vst [vmem:[%s229 + $0xc] sm:$0xf] %v3230
      %3263 = vst [vmem:[%s229 + $0x10] sm:$0xf] %v3231
      %3264 = vst [vmem:[%s229 + $0x14] sm:$0xf] %v3232
      %3265 = vst [vmem:[%s229 + $0x18] sm:$0xf] %v3233
      %3266 = vst [vmem:[%s229 + $0x1c] sm:$0xf] %v3234
      %3267 = vst [vmem:[%s229 + $0x20] sm:$0xf] %v3235
      %3268 = vst [vmem:[%s229 + $0x24] sm:$0xf] %v3236
      %3269 = vst [vmem:[%s229 + $0x28] sm:$0xf] %v3237
      %3270 = vst [vmem:[%s229 + $0x2c] sm:$0xf] %v3238
      %3271 = vst [vmem:[%s229 + $0x30] sm:$0xf] %v3239
      %3272 = vst [vmem:[%s229 + $0x34] sm:$0xf] %v3240
      %3273 = vst [vmem:[%s229 + $0x38] sm:$0xf] %v3241
      %3274 = vst [vmem:[%s229 + $0x3c] sm:$0xf] %v3242
      %s3275 = smul.u32 16, %s16
      %p3276 = scmp.lt.s32.totalorder %s3275, 31
      %s3277 = scalar_select %p3276, %s3275, 31
      %s3278 = smul.addr %s3277, 4
      %s3279 = scalar_lea.vmem %s5, %s3278
      // Predicated region
      $region41: #{model_ensemble_forward.1} parent=39 // pred_check
        %p3280 = pneg %p144
      $region42: #{model_ensemble_forward.1} parent=39 // pred_check_branch
        %3282 = sbr.rel (%p3280) target = $region44
      $region43: #{model_ensemble_forward.1} parent=39 // pred_region
        %s3283 = smul.u32 16, %s16
      $region44: #{model_ensemble_forward.1} parent=39 // pred_fallthru
        _
    $region40: #{model_ensemble_forward.1} parent=5 // pred_fallthru
      _
    %p3284 = scmp.le.s32.totalorder 2, %s11
    // Predicated region
    $region45: #{model_ensemble_forward.1} parent=5 // pred_check
      %p3285 = pneg %p3284
    $region46: #{model_ensemble_forward.1} parent=5 // pred_check_branch
      %3287 = sbr.rel (%p3285) target = $region48
    $region47: #{model_ensemble_forward.1} parent=5 // pred_region
      %s3288 = ssub.s32 %s11, 2
      // Predicated region
      $region49: #{model_ensemble_forward.1} parent=47 // pred_check
        %p3289 = pneg %p150
      $region50: #{model_ensemble_forward.1} parent=47 // pred_check_branch
        %3291 = sbr.rel (%p3289) target = $region52
      $region51: #{model_ensemble_forward.1} parent=47 // pred_region
        %s3292 = smul.u32 16, %s17
        %p3293 = scmp.lt.s32.totalorder %s3292, 31
        %s3294 = scalar_select %p3293, %s3292, 31
        %s3295 = smul.addr %s3294, 4
        %s3296 = scalar_lea.vmem %s5, %s3295
      $region52: #{model_ensemble_forward.1} parent=47 // pred_fallthru
        _
    $region48: #{model_ensemble_forward.1} parent=5 // pred_fallthru
      _
  $region6: #{model_ensemble_forward.1} parent=0 // loop_footer
    %s15 = sadd.s32 1, %s11
  $region7: #{model_ensemble_forward.1} parent=0 // loop_footer_branch
    %10 = sbr.rel target = $region3
  $region8: #{model_ensemble_forward.1} parent=0 // loop_exit
    _

</llo_original>
